<compile_context>
chip_gen: v6e
topology: v6e:2x2x1
jax: 0.10.0
libtpu: 0.0.40
codegen_flags: <defaults>
</compile_context>

<pallas_src>
import math

import jax
import jax.numpy as jnp
from jax.experimental import pallas as pl
from jax.experimental.pallas import tpu as pltpu

# ---------------- model hyper-parameters (small, synthetic) -----------------
VOCAB = 100
B = 2            # batch
S = 8            # sequence length
BS = B * S       # folded rows
H = 32           # hidden size
NH = 2           # attention heads
DH = H // NH     # head dim
F = 64           # FFN intermediate size
LN_EPS = 1e-12   # BERT default

# packed-slab geometry
WR = max(H, F)           # weight-slab rows (64)
WC = 5 * H + F           # weight-slab cols (224): [wqkv 96 | wo 32 | w1 64 | w2 32]
AR = 8 + BS              # aux-slab rows (24): 8 param rows + BS pos/mask rows
AC = 3 * H               # aux-slab cols (96)


def _layer_norm(x, gamma, beta):
    mean = jnp.mean(x, axis=-1, keepdims=True)
    var = jnp.mean((x - mean) ** 2, axis=-1, keepdims=True)
    inv = jax.lax.rsqrt(var + LN_EPS)
    return (x - mean) * inv * gamma + beta


def encoder_kernel(
    ids_ref,       # (BS,) int32 token ids, SMEM
    tok_emb_ref,   # (VOCAB, H) f32 token embedding table, VMEM
    w_ref,         # (WR, WC)  f32 packed weight slab, VMEM
    aux_ref,       # (AR, AC)  f32 packed biases / LN params / pos emb / mask, VMEM
    o_ref,         # (BS, H)   f32 last_hidden_state (folded)
    x_scr,         # (BS, H)   f32 VMEM scratch: gathered embeddings
    ctx_scr,       # (BS, H)   f32 VMEM scratch: per-head attention context
):
    # ---- embedding gather (dynamic sublane slices, ids read from SMEM) ----
    for i in range(BS):                                   # static unrolled, BS=16
        tid = ids_ref[i]
        x_scr[i:i + 1, :] = tok_emb_ref[pl.ds(tid, 1), :]

    pos = aux_ref[8:8 + BS, 0:H]                          # (BS, H) batch-tiled pos emb
    mask_bias = aux_ref[8:8 + BS, H:H + BS]               # (BS, BS) block-diag mask
    x = x_scr[...] + pos                                  # (BS, H)

    # ---- fused QKV projection (Q columns pre-scaled by 1/sqrt(DH)) ----
    wqkv = w_ref[0:H, 0:3 * H]
    bqkv = aux_ref[0:1, 0:3 * H]
    qkv = jnp.dot(x, wqkv, preferred_element_type=jnp.float32) + bqkv   # (BS, 3H)

    # ---- attention: single (BS, BS) score matmul per head, batches kept
    #      independent by the precomputed block-diagonal additive mask ----
    for h in range(NH):                                   # static, tiny unrolled loop
        qh = qkv[:, h * DH:(h + 1) * DH]                  # (BS, DH), pre-scaled
        kh = qkv[:, H + h * DH:H + (h + 1) * DH]          # (BS, DH)
        vh = qkv[:, 2 * H + h * DH:2 * H + (h + 1) * DH]  # (BS, DH)

        # q . k^T without an explicit transpose: contract last dims.
        scores = jax.lax.dot_general(
            qh, kh, (((1,), (1,)), ((), ())),
            preferred_element_type=jnp.float32) + mask_bias            # (BS, BS)

        m = jnp.max(scores, axis=-1, keepdims=True)
        p = jnp.exp(scores - m)
        p = p / jnp.sum(p, axis=-1, keepdims=True)        # exact division (review)

        # write head context at its static lane offset -> single Wo matmul below
        ctx_scr[:, h * DH:(h + 1) * DH] = jnp.dot(
            p, vh, preferred_element_type=jnp.float32)

    wo = w_ref[0:H, 3 * H:4 * H]
    bo = aux_ref[1:2, 0:H]
    attn_out = jnp.dot(ctx_scr[...], wo, preferred_element_type=jnp.float32) + bo

    # ---- residual + LayerNorm 1 ----
    ln1_g = aux_ref[2:3, 0:H]
    ln1_b = aux_ref[3:4, 0:H]
    x1 = _layer_norm(x + attn_out, ln1_g, ln1_b)

    # ---- feed-forward ----
    w1 = w_ref[0:H, 4 * H:4 * H + F]
    b1 = aux_ref[4:5, 0:F]
    w2 = w_ref[0:F, 4 * H + F:5 * H + F]
    b2 = aux_ref[5:6, 0:H]
    hmid = jnp.dot(x1, w1, preferred_element_type=jnp.float32) + b1
    hmid = jax.nn.gelu(hmid, approximate=True)
    ffn_out = jnp.dot(hmid, w2, preferred_element_type=jnp.float32) + b2

    # ---- residual + LayerNorm 2 ----
    ln2_g = aux_ref[6:7, 0:H]
    ln2_b = aux_ref[7:8, 0:H]
    o_ref[...] = _layer_norm(x1 + ffn_out, ln2_g, ln2_b).astype(o_ref.dtype)


def pack_params(params, pos_emb):
    """One-time prep: fuse QKV (Q pre-scaled), pack weights into one slab and
    all vector params / pos-emb / attention mask into one aux slab."""
    (wq, bq, wk, bk, wv, bv, wo, bo,
     ln1_g, ln1_b, w1, b1, w2, b2, ln2_g, ln2_b) = params
    scale = 1.0 / math.sqrt(DH)
    wqkv = jnp.concatenate([wq * scale, wk, wv], axis=1)   # (H, 3H)
    bqkv = jnp.concatenate([bq * scale, bk, bv], axis=1)   # (1, 3H)

    w_slab = jnp.zeros((WR, WC), jnp.float32)
    w_slab = w_slab.at[0:H, 0:3 * H].set(wqkv)
    w_slab = w_slab.at[0:H, 3 * H:4 * H].set(wo)
    w_slab = w_slab.at[0:H, 4 * H:4 * H + F].set(w1)
    w_slab = w_slab.at[0:F, 4 * H + F:5 * H + F].set(w2)

    aux = jnp.zeros((AR, AC), jnp.float32)
    aux = aux.at[0:1, 0:3 * H].set(bqkv)
    aux = aux.at[1:2, 0:H].set(bo)
    aux = aux.at[2:3, 0:H].set(ln1_g)
    aux = aux.at[3:4, 0:H].set(ln1_b)
    aux = aux.at[4:5, 0:F].set(b1)
    aux = aux.at[5:6, 0:H].set(b2)
    aux = aux.at[6:7, 0:H].set(ln2_g)
    aux = aux.at[7:8, 0:H].set(ln2_b)
    # batch-tiled positional embedding
    aux = aux.at[8:8 + BS, 0:H].set(jnp.tile(pos_emb, (B, 1)))
    # precomputed block-diagonal additive mask (keeps batches independent)
    row_b = jnp.arange(BS) // S
    mask_bias = jnp.where(row_b[:, None] == row_b[None, :], 0.0, -1e30)
    aux = aux.at[8:8 + BS, H:H + BS].set(mask_bias.astype(jnp.float32))
    return w_slab, aux


@jax.jit
def hf_encoder_forward(token_ids, tok_emb, w_slab, aux_slab):
    """token_ids: (B, S) int32. Returns last_hidden_state (B, S, H) float32."""
    ids = token_ids.reshape(BS).astype(jnp.int32)
    out = pl.pallas_call(
        encoder_kernel,
        out_shape=jax.ShapeDtypeStruct((BS, H), jnp.float32),
        # Single invocation, no grid: 4 operands (ids->SMEM, rest full-array VMEM).
        in_specs=[
            pl.BlockSpec(memory_space=pltpu.MemorySpace.SMEM),   # token ids
            pl.BlockSpec(memory_space=pltpu.MemorySpace.VMEM),   # embedding table
            pl.BlockSpec(memory_space=pltpu.MemorySpace.VMEM),   # weight slab
            pl.BlockSpec(memory_space=pltpu.MemorySpace.VMEM),   # aux slab
        ],
        out_specs=pl.BlockSpec(memory_space=pltpu.MemorySpace.VMEM),
        scratch_shapes=[
            pltpu.VMEM((BS, H), jnp.float32),   # gathered embeddings
            pltpu.VMEM((BS, H), jnp.float32),   # attention context
        ],
    )(ids, tok_emb, w_slab, aux_slab)
    return out.reshape(B, S, H)


# ------------------------- pure-JAX reference -------------------------------
def reference_forward(emb, params):
    (wq, bq, wk, bk, wv, bv, wo, bo,
     ln1_g, ln1_b, w1, b1, w2, b2, ln2_g, ln2_b) = params

    def one(x):
        q = x @ wq + bq
        k = x @ wk + bk
        v = x @ wv + bv
        qh = q.reshape(S, NH, DH).transpose(1, 0, 2)
        kh = k.reshape(S, NH, DH).transpose(1, 0, 2)
        vh = v.reshape(S, NH, DH).transpose(1, 0, 2)
        scores = jnp.einsum("hqd,hkd->hqk", qh, kh) / (DH ** 0.5)
        p = jax.nn.softmax(scores, axis=-1)
        ctx = jnp.einsum("hqk,hkd->hqd", p, vh).transpose(1, 0, 2).reshape(S, H)
        attn_out = ctx @ wo + bo
        x1 = _layer_norm(x + attn_out, ln1_g, ln1_b)
        hmid = jax.nn.gelu(x1 @ w1 + b1, approximate=True)
        ffn_out = hmid @ w2 + b2
        return _layer_norm(x1 + ffn_out, ln2_g, ln2_b)

    return jax.vmap(one)(emb)


if __name__ == "__main__":
    key = jax.random.PRNGKey(0)
    keys = jax.random.split(key, 20)

    # Deterministic synthetic "pretrained" parameters (in place of a HF checkpoint).
    # TODO(synk): the real HuggingFaceModel loads arbitrary pretrained weights /
    #             tokenizers via transformers; here parameters are synthesized.
    init = lambda k, shp, s=0.05: (jax.random.normal(k, shp, jnp.float32) * s)
    tok_emb = init(keys[0], (VOCAB, H), 0.1)
    pos_emb = init(keys[1], (S, H), 0.1)
    wq, bq = init(keys[2], (H, H)), jnp.zeros((1, H), jnp.float32)
    wk, bk = init(keys[3], (H, H)), jnp.zeros((1, H), jnp.float32)
    wv, bv = init(keys[4], (H, H)), jnp.zeros((1, H), jnp.float32)
    wo, bo = init(keys[5], (H, H)), jnp.zeros((1, H), jnp.float32)
    ln1_g, ln1_b = jnp.ones((1, H), jnp.float32), jnp.zeros((1, H), jnp.float32)
    w1, b1 = init(keys[6], (H, F)), jnp.zeros((1, F), jnp.float32)
    w2, b2 = init(keys[7], (F, H)), jnp.zeros((1, H), jnp.float32)
    ln2_g, ln2_b = jnp.ones((1, H), jnp.float32), jnp.zeros((1, H), jnp.float32)
    params = (wq, bq, wk, bk, wv, bv, wo, bo,
              ln1_g, ln1_b, w1, b1, w2, b2, ln2_g, ln2_b)

    # Packed once, outside the forward (weights slab + aux slab).
    w_slab, aux_slab = pack_params(params, pos_emb)

    # Input: token ids, exactly what an AutoModel forward consumes.
    token_ids = jax.random.randint(keys[8], (B, S), 0, VOCAB)

    out = hf_encoder_forward(token_ids, tok_emb, w_slab, aux_slab)
    jax.block_until_ready(out)

    # Reference path materializes embeddings in plain JAX (check-only).
    emb = tok_emb[token_ids] + pos_emb[None, :, :]   # (B, S, H) float32
    ref = reference_forward(emb, params)
    assert out.shape == (B, S, H)
    # Exact softmax division in-kernel -> tight tolerance is back to 1e-4.
    assert jnp.allclose(out, ref, atol=1e-4, rtol=1e-4), "mismatch vs reference"

    print("KERNEL_OK")
</pallas_src>

<mosaic_0001>
module attributes {stable_mosaic.version = 11 : i64} {
  func.func @encoder_kernel(%arg0: memref<16xi32, #tpu.memory_space<smem>>, %arg1: memref<100x32xf32, #tpu.memory_space<vmem>>, %arg2: memref<64x224xf32, #tpu.memory_space<vmem>>, %arg3: memref<24x96xf32, #tpu.memory_space<vmem>>, %arg4: memref<16x32xf32, #tpu.memory_space<vmem>>, %arg5: memref<16x32xf32, #tpu.memory_space<vmem>>, %arg6: memref<16x32xf32, #tpu.memory_space<vmem>>) attributes {dimension_semantics = [], scalar_prefetch = 0 : i64, scratch_operands = 2 : i64, tpu.core_type = #tpu.core_type<tc>} {
    %c0 = arith.constant 0 : index
    %0 = memref.load %arg0[%c0] : memref<16xi32, #tpu.memory_space<smem>>
    %1 = arith.index_cast %0 : i32 to index
    %c0_0 = arith.constant 0 : index
    %2 = vector.load %arg1[%1, %c0_0] : memref<100x32xf32, #tpu.memory_space<vmem>>, vector<1x32xf32>
    %c0_1 = arith.constant 0 : index
    %c0_2 = arith.constant 0 : index
    %3 = vector.load %arg5[%c0_1, %c0_2] : memref<16x32xf32, #tpu.memory_space<vmem>>, vector<1x32xf32>
    tpu.vector_store %arg5[%c0_1, %c0_2], %2 {strides = array<i32>} : memref<16x32xf32, #tpu.memory_space<vmem>>, vector<1x32xf32>,
    %c1 = arith.constant 1 : index
    %4 = memref.load %arg0[%c1] : memref<16xi32, #tpu.memory_space<smem>>
    %5 = arith.index_cast %4 : i32 to index
    %c0_3 = arith.constant 0 : index
    %6 = vector.load %arg1[%5, %c0_3] : memref<100x32xf32, #tpu.memory_space<vmem>>, vector<1x32xf32>
    %c1_4 = arith.constant 1 : index
    %c0_5 = arith.constant 0 : index
    %7 = vector.load %arg5[%c1_4, %c0_5] : memref<16x32xf32, #tpu.memory_space<vmem>>, vector<1x32xf32>
    tpu.vector_store %arg5[%c1_4, %c0_5], %6 {strides = array<i32>} : memref<16x32xf32, #tpu.memory_space<vmem>>, vector<1x32xf32>,
    %c2 = arith.constant 2 : index
    %8 = memref.load %arg0[%c2] : memref<16xi32, #tpu.memory_space<smem>>
    %9 = arith.index_cast %8 : i32 to index
    %c0_6 = arith.constant 0 : index
    %10 = vector.load %arg1[%9, %c0_6] : memref<100x32xf32, #tpu.memory_space<vmem>>, vector<1x32xf32>
    %c2_7 = arith.constant 2 : index
    %c0_8 = arith.constant 0 : index
    %11 = vector.load %arg5[%c2_7, %c0_8] : memref<16x32xf32, #tpu.memory_space<vmem>>, vector<1x32xf32>
    tpu.vector_store %arg5[%c2_7, %c0_8], %10 {strides = array<i32>} : memref<16x32xf32, #tpu.memory_space<vmem>>, vector<1x32xf32>,
    %c3 = arith.constant 3 : index
    %12 = memref.load %arg0[%c3] : memref<16xi32, #tpu.memory_space<smem>>
    %13 = arith.index_cast %12 : i32 to index
    %c0_9 = arith.constant 0 : index
    %14 = vector.load %arg1[%13, %c0_9] : memref<100x32xf32, #tpu.memory_space<vmem>>, vector<1x32xf32>
    %c3_10 = arith.constant 3 : index
    %c0_11 = arith.constant 0 : index
    %15 = vector.load %arg5[%c3_10, %c0_11] : memref<16x32xf32, #tpu.memory_space<vmem>>, vector<1x32xf32>
    tpu.vector_store %arg5[%c3_10, %c0_11], %14 {strides = array<i32>} : memref<16x32xf32, #tpu.memory_space<vmem>>, vector<1x32xf32>,
    %c4 = arith.constant 4 : index
    %16 = memref.load %arg0[%c4] : memref<16xi32, #tpu.memory_space<smem>>
    %17 = arith.index_cast %16 : i32 to index
    %c0_12 = arith.constant 0 : index
    %18 = vector.load %arg1[%17, %c0_12] : memref<100x32xf32, #tpu.memory_space<vmem>>, vector<1x32xf32>
    %c4_13 = arith.constant 4 : index
    %c0_14 = arith.constant 0 : index
    %19 = vector.load %arg5[%c4_13, %c0_14] : memref<16x32xf32, #tpu.memory_space<vmem>>, vector<1x32xf32>
    tpu.vector_store %arg5[%c4_13, %c0_14], %18 {strides = array<i32>} : memref<16x32xf32, #tpu.memory_space<vmem>>, vector<1x32xf32>,
    %c5 = arith.constant 5 : index
    %20 = memref.load %arg0[%c5] : memref<16xi32, #tpu.memory_space<smem>>
    %21 = arith.index_cast %20 : i32 to index
    %c0_15 = arith.constant 0 : index
    %22 = vector.load %arg1[%21, %c0_15] : memref<100x32xf32, #tpu.memory_space<vmem>>, vector<1x32xf32>
    %c5_16 = arith.constant 5 : index
    %c0_17 = arith.constant 0 : index
    %23 = vector.load %arg5[%c5_16, %c0_17] : memref<16x32xf32, #tpu.memory_space<vmem>>, vector<1x32xf32>
    tpu.vector_store %arg5[%c5_16, %c0_17], %22 {strides = array<i32>} : memref<16x32xf32, #tpu.memory_space<vmem>>, vector<1x32xf32>,
    %c6 = arith.constant 6 : index
    %24 = memref.load %arg0[%c6] : memref<16xi32, #tpu.memory_space<smem>>
    %25 = arith.index_cast %24 : i32 to index
    %c0_18 = arith.constant 0 : index
    %26 = vector.load %arg1[%25, %c0_18] : memref<100x32xf32, #tpu.memory_space<vmem>>, vector<1x32xf32>
    %c6_19 = arith.constant 6 : index
    %c0_20 = arith.constant 0 : index
    %27 = vector.load %arg5[%c6_19, %c0_20] : memref<16x32xf32, #tpu.memory_space<vmem>>, vector<1x32xf32>
    tpu.vector_store %arg5[%c6_19, %c0_20], %26 {strides = array<i32>} : memref<16x32xf32, #tpu.memory_space<vmem>>, vector<1x32xf32>,
    %c7 = arith.constant 7 : index
    %28 = memref.load %arg0[%c7] : memref<16xi32, #tpu.memory_space<smem>>
    %29 = arith.index_cast %28 : i32 to index
    %c0_21 = arith.constant 0 : index
    %30 = vector.load %arg1[%29, %c0_21] : memref<100x32xf32, #tpu.memory_space<vmem>>, vector<1x32xf32>
    %c7_22 = arith.constant 7 : index
    %c0_23 = arith.constant 0 : index
    %31 = vector.load %arg5[%c7_22, %c0_23] : memref<16x32xf32, #tpu.memory_space<vmem>>, vector<1x32xf32>
    tpu.vector_store %arg5[%c7_22, %c0_23], %30 {strides = array<i32>} : memref<16x32xf32, #tpu.memory_space<vmem>>, vector<1x32xf32>,
    %c8 = arith.constant 8 : index
    %32 = memref.load %arg0[%c8] : memref<16xi32, #tpu.memory_space<smem>>
    %33 = arith.index_cast %32 : i32 to index
    %c0_24 = arith.constant 0 : index
    %34 = vector.load %arg1[%33, %c0_24] : memref<100x32xf32, #tpu.memory_space<vmem>>, vector<1x32xf32>
    %c8_25 = arith.constant 8 : index
    %c0_26 = arith.constant 0 : index
    %35 = vector.load %arg5[%c8_25, %c0_26] : memref<16x32xf32, #tpu.memory_space<vmem>>, vector<1x32xf32>
    tpu.vector_store %arg5[%c8_25, %c0_26], %34 {strides = array<i32>} : memref<16x32xf32, #tpu.memory_space<vmem>>, vector<1x32xf32>,
    %c9 = arith.constant 9 : index
    %36 = memref.load %arg0[%c9] : memref<16xi32, #tpu.memory_space<smem>>
    %37 = arith.index_cast %36 : i32 to index
    %c0_27 = arith.constant 0 : index
    %38 = vector.load %arg1[%37, %c0_27] : memref<100x32xf32, #tpu.memory_space<vmem>>, vector<1x32xf32>
    %c9_28 = arith.constant 9 : index
    %c0_29 = arith.constant 0 : index
    %39 = vector.load %arg5[%c9_28, %c0_29] : memref<16x32xf32, #tpu.memory_space<vmem>>, vector<1x32xf32>
    tpu.vector_store %arg5[%c9_28, %c0_29], %38 {strides = array<i32>} : memref<16x32xf32, #tpu.memory_space<vmem>>, vector<1x32xf32>,
    %c10 = arith.constant 10 : index
    %40 = memref.load %arg0[%c10] : memref<16xi32, #tpu.memory_space<smem>>
    %41 = arith.index_cast %40 : i32 to index
    %c0_30 = arith.constant 0 : index
    %42 = vector.load %arg1[%41, %c0_30] : memref<100x32xf32, #tpu.memory_space<vmem>>, vector<1x32xf32>
    %c10_31 = arith.constant 10 : index
    %c0_32 = arith.constant 0 : index
    %43 = vector.load %arg5[%c10_31, %c0_32] : memref<16x32xf32, #tpu.memory_space<vmem>>, vector<1x32xf32>
    tpu.vector_store %arg5[%c10_31, %c0_32], %42 {strides = array<i32>} : memref<16x32xf32, #tpu.memory_space<vmem>>, vector<1x32xf32>,
    %c11 = arith.constant 11 : index
    %44 = memref.load %arg0[%c11] : memref<16xi32, #tpu.memory_space<smem>>
    %45 = arith.index_cast %44 : i32 to index
    %c0_33 = arith.constant 0 : index
    %46 = vector.load %arg1[%45, %c0_33] : memref<100x32xf32, #tpu.memory_space<vmem>>, vector<1x32xf32>
    %c11_34 = arith.constant 11 : index
    %c0_35 = arith.constant 0 : index
    %47 = vector.load %arg5[%c11_34, %c0_35] : memref<16x32xf32, #tpu.memory_space<vmem>>, vector<1x32xf32>
    tpu.vector_store %arg5[%c11_34, %c0_35], %46 {strides = array<i32>} : memref<16x32xf32, #tpu.memory_space<vmem>>, vector<1x32xf32>,
    %c12 = arith.constant 12 : index
    %48 = memref.load %arg0[%c12] : memref<16xi32, #tpu.memory_space<smem>>
    %49 = arith.index_cast %48 : i32 to index
    %c0_36 = arith.constant 0 : index
    %50 = vector.load %arg1[%49, %c0_36] : memref<100x32xf32, #tpu.memory_space<vmem>>, vector<1x32xf32>
    %c12_37 = arith.constant 12 : index
    %c0_38 = arith.constant 0 : index
    %51 = vector.load %arg5[%c12_37, %c0_38] : memref<16x32xf32, #tpu.memory_space<vmem>>, vector<1x32xf32>
    tpu.vector_store %arg5[%c12_37, %c0_38], %50 {strides = array<i32>} : memref<16x32xf32, #tpu.memory_space<vmem>>, vector<1x32xf32>,
    %c13 = arith.constant 13 : index
    %52 = memref.load %arg0[%c13] : memref<16xi32, #tpu.memory_space<smem>>
    %53 = arith.index_cast %52 : i32 to index
    %c0_39 = arith.constant 0 : index
    %54 = vector.load %arg1[%53, %c0_39] : memref<100x32xf32, #tpu.memory_space<vmem>>, vector<1x32xf32>
    %c13_40 = arith.constant 13 : index
    %c0_41 = arith.constant 0 : index
    %55 = vector.load %arg5[%c13_40, %c0_41] : memref<16x32xf32, #tpu.memory_space<vmem>>, vector<1x32xf32>
    tpu.vector_store %arg5[%c13_40, %c0_41], %54 {strides = array<i32>} : memref<16x32xf32, #tpu.memory_space<vmem>>, vector<1x32xf32>,
    %c14 = arith.constant 14 : index
    %56 = memref.load %arg0[%c14] : memref<16xi32, #tpu.memory_space<smem>>
    %57 = arith.index_cast %56 : i32 to index
    %c0_42 = arith.constant 0 : index
    %58 = vector.load %arg1[%57, %c0_42] : memref<100x32xf32, #tpu.memory_space<vmem>>, vector<1x32xf32>
    %c14_43 = arith.constant 14 : index
    %c0_44 = arith.constant 0 : index
    %59 = vector.load %arg5[%c14_43, %c0_44] : memref<16x32xf32, #tpu.memory_space<vmem>>, vector<1x32xf32>
    tpu.vector_store %arg5[%c14_43, %c0_44], %58 {strides = array<i32>} : memref<16x32xf32, #tpu.memory_space<vmem>>, vector<1x32xf32>,
    %c15 = arith.constant 15 : index
    %60 = memref.load %arg0[%c15] : memref<16xi32, #tpu.memory_space<smem>>
    %61 = arith.index_cast %60 : i32 to index
    %c0_45 = arith.constant 0 : index
    %62 = vector.load %arg1[%61, %c0_45] : memref<100x32xf32, #tpu.memory_space<vmem>>, vector<1x32xf32>
    %c15_46 = arith.constant 15 : index
    %c0_47 = arith.constant 0 : index
    %63 = vector.load %arg5[%c15_46, %c0_47] : memref<16x32xf32, #tpu.memory_space<vmem>>, vector<1x32xf32>
    tpu.vector_store %arg5[%c15_46, %c0_47], %62 {strides = array<i32>} : memref<16x32xf32, #tpu.memory_space<vmem>>, vector<1x32xf32>,
    %c8_48 = arith.constant 8 : index
    %c0_49 = arith.constant 0 : index
    %64 = vector.load %arg3[%c8_48, %c0_49] : memref<24x96xf32, #tpu.memory_space<vmem>>, vector<16x32xf32>
    %c8_50 = arith.constant 8 : index
    %c32 = arith.constant 32 : index
    %65 = vector.load %arg3[%c8_50, %c32] : memref<24x96xf32, #tpu.memory_space<vmem>>, vector<16x16xf32>
    %c0_51 = arith.constant 0 : index
    %c0_52 = arith.constant 0 : index
    %66 = vector.load %arg5[%c0_51, %c0_52] : memref<16x32xf32, #tpu.memory_space<vmem>>, vector<16x32xf32>
    %67 = arith.addf %66, %64 : vector<16x32xf32>
    %c0_53 = arith.constant 0 : index
    %c0_54 = arith.constant 0 : index
    %68 = vector.load %arg2[%c0_53, %c0_54] : memref<64x224xf32, #tpu.memory_space<vmem>>, vector<32x96xf32>
    %c0_55 = arith.constant 0 : index
    %c0_56 = arith.constant 0 : index
    %69 = vector.load %arg3[%c0_55, %c0_56] : memref<24x96xf32, #tpu.memory_space<vmem>>, vector<1x96xf32>
    %cst = arith.constant dense<0.000000e+00> : vector<16x96xf32>
    %70 = tpu.matmul %67, %68, %cst {dimension_numbers = #tpu.dot_dimension_numbers<[1], [0], [0], [1], [0, 0, 1, 1], [], []>} : vector<16x32xf32>, vector<32x96xf32>, vector<16x96xf32> -> vector<16x96xf32>
    %71 = vector.broadcast %69 : vector<1x96xf32> to vector<16x96xf32>
    %72 = arith.addf %70, %71 : vector<16x96xf32>
    %73 = vector.extract_strided_slice %72 {offsets = [0, 0], sizes = [16, 16], strides = [1, 1]} : vector<16x96xf32> to vector<16x16xf32>
    %74 = vector.extract_strided_slice %72 {offsets = [0, 32], sizes = [16, 16], strides = [1, 1]} : vector<16x96xf32> to vector<16x16xf32>
    %75 = vector.extract_strided_slice %72 {offsets = [0, 64], sizes = [16, 16], strides = [1, 1]} : vector<16x96xf32> to vector<16x16xf32>
    %cst_57 = arith.constant dense<0.000000e+00> : vector<16x16xf32>
    %76 = tpu.matmul %73, %74, %cst_57 {dimension_numbers = #tpu.dot_dimension_numbers<[1], [1], [0], [0], [0, 0, 1, 0], [], []>} : vector<16x16xf32>, vector<16x16xf32>, vector<16x16xf32> -> vector<16x16xf32>
    %77 = arith.addf %76, %65 : vector<16x16xf32>
    %cst_58 = arith.constant dense<0xFF800000> : vector<16xf32>
    %78 = vector.multi_reduction <maximumf>, %77, %cst_58 [1] : vector<16x16xf32> to vector<16xf32>
    %79 = vector.shape_cast %78 : vector<16xf32> to vector<16x1xf32>
    %80 = vector.broadcast %79 : vector<16x1xf32> to vector<16x16xf32>
    %81 = arith.subf %77, %80 : vector<16x16xf32>
    %82 = math.exp %81 : vector<16x16xf32>
    %cst_59 = arith.constant dense<0.000000e+00> : vector<16xf32>
    %83 = vector.multi_reduction <add>, %82, %cst_59 [1] : vector<16x16xf32> to vector<16xf32>
    %84 = vector.shape_cast %83 : vector<16xf32> to vector<16x1xf32>
    %85 = vector.broadcast %84 : vector<16x1xf32> to vector<16x16xf32>
    %86 = arith.divf %82, %85 : vector<16x16xf32>
    %cst_60 = arith.constant dense<0.000000e+00> : vector<16x16xf32>
    %87 = tpu.matmul %86, %75, %cst_60 {dimension_numbers = #tpu.dot_dimension_numbers<[1], [0], [0], [1], [0, 0, 1, 1], [], []>} : vector<16x16xf32>, vector<16x16xf32>, vector<16x16xf32> -> vector<16x16xf32>
    %c0_61 = arith.constant 0 : index
    %c0_62 = arith.constant 0 : index
    %88 = vector.load %arg6[%c0_61, %c0_62] : memref<16x32xf32, #tpu.memory_space<vmem>>, vector<16x16xf32>
    tpu.vector_store %arg6[%c0_61, %c0_62], %87 {strides = array<i32>} : memref<16x32xf32, #tpu.memory_space<vmem>>, vector<16x16xf32>,
    %89 = vector.extract_strided_slice %72 {offsets = [0, 16], sizes = [16, 16], strides = [1, 1]} : vector<16x96xf32> to vector<16x16xf32>
    %90 = vector.extract_strided_slice %72 {offsets = [0, 48], sizes = [16, 16], strides = [1, 1]} : vector<16x96xf32> to vector<16x16xf32>
    %91 = vector.extract_strided_slice %72 {offsets = [0, 80], sizes = [16, 16], strides = [1, 1]} : vector<16x96xf32> to vector<16x16xf32>
    %cst_63 = arith.constant dense<0.000000e+00> : vector<16x16xf32>
    %92 = tpu.matmul %89, %90, %cst_63 {dimension_numbers = #tpu.dot_dimension_numbers<[1], [1], [0], [0], [0, 0, 1, 0], [], []>} : vector<16x16xf32>, vector<16x16xf32>, vector<16x16xf32> -> vector<16x16xf32>
    %93 = arith.addf %92, %65 : vector<16x16xf32>
    %cst_64 = arith.constant dense<0xFF800000> : vector<16xf32>
    %94 = vector.multi_reduction <maximumf>, %93, %cst_64 [1] : vector<16x16xf32> to vector<16xf32>
    %95 = vector.shape_cast %94 : vector<16xf32> to vector<16x1xf32>
    %96 = vector.broadcast %95 : vector<16x1xf32> to vector<16x16xf32>
    %97 = arith.subf %93, %96 : vector<16x16xf32>
    %98 = math.exp %97 : vector<16x16xf32>
    %cst_65 = arith.constant dense<0.000000e+00> : vector<16xf32>
    %99 = vector.multi_reduction <add>, %98, %cst_65 [1] : vector<16x16xf32> to vector<16xf32>
    %100 = vector.shape_cast %99 : vector<16xf32> to vector<16x1xf32>
    %101 = vector.broadcast %100 : vector<16x1xf32> to vector<16x16xf32>
    %102 = arith.divf %98, %101 : vector<16x16xf32>
    %cst_66 = arith.constant dense<0.000000e+00> : vector<16x16xf32>
    %103 = tpu.matmul %102, %91, %cst_66 {dimension_numbers = #tpu.dot_dimension_numbers<[1], [0], [0], [1], [0, 0, 1, 1], [], []>} : vector<16x16xf32>, vector<16x16xf32>, vector<16x16xf32> -> vector<16x16xf32>
    %c0_67 = arith.constant 0 : index
    %c16 = arith.constant 16 : index
    %104 = vector.load %arg6[%c0_67, %c16] : memref<16x32xf32, #tpu.memory_space<vmem>>, vector<16x16xf32>
    tpu.vector_store %arg6[%c0_67, %c16], %103 {strides = array<i32>} : memref<16x32xf32, #tpu.memory_space<vmem>>, vector<16x16xf32>,
    %c0_68 = arith.constant 0 : index
    %c96 = arith.constant 96 : index
    %105 = vector.load %arg2[%c0_68, %c96] : memref<64x224xf32, #tpu.memory_space<vmem>>, vector<32x32xf32>
    %c1_69 = arith.constant 1 : index
    %c0_70 = arith.constant 0 : index
    %106 = vector.load %arg3[%c1_69, %c0_70] : memref<24x96xf32, #tpu.memory_space<vmem>>, vector<1x32xf32>
    %c0_71 = arith.constant 0 : index
    %c0_72 = arith.constant 0 : index
    %107 = vector.load %arg6[%c0_71, %c0_72] : memref<16x32xf32, #tpu.memory_space<vmem>>, vector<16x32xf32>
    %cst_73 = arith.constant dense<0.000000e+00> : vector<16x32xf32>
    %108 = tpu.matmul %107, %105, %cst_73 {dimension_numbers = #tpu.dot_dimension_numbers<[1], [0], [0], [1], [0, 0, 1, 1], [], []>} : vector<16x32xf32>, vector<32x32xf32>, vector<16x32xf32> -> vector<16x32xf32>
    %109 = vector.broadcast %106 : vector<1x32xf32> to vector<16x32xf32>
    %110 = arith.addf %108, %109 : vector<16x32xf32>
    %c2_74 = arith.constant 2 : index
    %c0_75 = arith.constant 0 : index
    %111 = vector.load %arg3[%c2_74, %c0_75] : memref<24x96xf32, #tpu.memory_space<vmem>>, vector<1x32xf32>
    %c3_76 = arith.constant 3 : index
    %c0_77 = arith.constant 0 : index
    %112 = vector.load %arg3[%c3_76, %c0_77] : memref<24x96xf32, #tpu.memory_space<vmem>>, vector<1x32xf32>
    %113 = arith.addf %67, %110 : vector<16x32xf32>
    %cst_78 = arith.constant dense<0.000000e+00> : vector<16xf32>
    %114 = vector.multi_reduction <add>, %113, %cst_78 [1] : vector<16x32xf32> to vector<16xf32>
    %115 = vector.shape_cast %114 : vector<16xf32> to vector<16x1xf32>
    %cst_79 = arith.constant 3.200000e+01 : f32
    %116 = vector.broadcast %cst_79 : f32 to vector<16x1xf32>
    %117 = arith.divf %115, %116 : vector<16x1xf32>
    %118 = vector.broadcast %117 : vector<16x1xf32> to vector<16x32xf32>
    %119 = arith.subf %113, %118 : vector<16x32xf32>
    %120 = arith.mulf %119, %119 : vector<16x32xf32>
    %cst_80 = arith.constant dense<0.000000e+00> : vector<16xf32>
    %121 = vector.multi_reduction <add>, %120, %cst_80 [1] : vector<16x32xf32> to vector<16xf32>
    %122 = vector.shape_cast %121 : vector<16xf32> to vector<16x1xf32>
    %cst_81 = arith.constant 3.200000e+01 : f32
    %123 = vector.broadcast %cst_81 : f32 to vector<16x1xf32>
    %124 = arith.divf %122, %123 : vector<16x1xf32>
    %cst_82 = arith.constant 9.99999996E-13 : f32
    %125 = vector.broadcast %cst_82 : f32 to vector<16x1xf32>
    %126 = arith.addf %124, %125 : vector<16x1xf32>
    %127 = math.rsqrt %126 : vector<16x1xf32>
    %128 = vector.broadcast %117 : vector<16x1xf32> to vector<16x32xf32>
    %129 = arith.subf %113, %128 : vector<16x32xf32>
    %130 = vector.broadcast %127 : vector<16x1xf32> to vector<16x32xf32>
    %131 = arith.mulf %129, %130 : vector<16x32xf32>
    %132 = vector.broadcast %111 : vector<1x32xf32> to vector<16x32xf32>
    %133 = arith.mulf %131, %132 : vector<16x32xf32>
    %134 = vector.broadcast %112 : vector<1x32xf32> to vector<16x32xf32>
    %135 = arith.addf %133, %134 : vector<16x32xf32>
    %c0_83 = arith.constant 0 : index
    %c128 = arith.constant 128 : index
    %136 = vector.load %arg2[%c0_83, %c128] : memref<64x224xf32, #tpu.memory_space<vmem>>, vector<32x64xf32>
    %c4_84 = arith.constant 4 : index
    %c0_85 = arith.constant 0 : index
    %137 = vector.load %arg3[%c4_84, %c0_85] : memref<24x96xf32, #tpu.memory_space<vmem>>, vector<1x64xf32>
    %c0_86 = arith.constant 0 : index
    %c192 = arith.constant 192 : index
    %138 = vector.load %arg2[%c0_86, %c192] : memref<64x224xf32, #tpu.memory_space<vmem>>, vector<64x32xf32>
    %c5_87 = arith.constant 5 : index
    %c0_88 = arith.constant 0 : index
    %139 = vector.load %arg3[%c5_87, %c0_88] : memref<24x96xf32, #tpu.memory_space<vmem>>, vector<1x32xf32>
    %cst_89 = arith.constant dense<0.000000e+00> : vector<16x64xf32>
    %140 = tpu.matmul %135, %136, %cst_89 {dimension_numbers = #tpu.dot_dimension_numbers<[1], [0], [0], [1], [0, 0, 1, 1], [], []>} : vector<16x32xf32>, vector<32x64xf32>, vector<16x64xf32> -> vector<16x64xf32>
    %141 = vector.broadcast %137 : vector<1x64xf32> to vector<16x64xf32>
    %142 = arith.addf %140, %141 : vector<16x64xf32>
    %143 = arith.mulf %142, %142 : vector<16x64xf32>
    %144 = arith.mulf %142, %143 : vector<16x64xf32>
    %cst_90 = arith.constant 4.471500e-02 : f32
    %145 = vector.broadcast %cst_90 : f32 to vector<16x64xf32>
    %146 = arith.mulf %145, %144 : vector<16x64xf32>
    %147 = arith.addf %142, %146 : vector<16x64xf32>
    %cst_91 = arith.constant 0.797884583 : f32
    %148 = vector.broadcast %cst_91 : f32 to vector<16x64xf32>
    %149 = arith.mulf %148, %147 : vector<16x64xf32>
    %150 = math.tanh %149 : vector<16x64xf32>
    %cst_92 = arith.constant 1.000000e+00 : f32
    %151 = vector.broadcast %cst_92 : f32 to vector<16x64xf32>
    %152 = arith.addf %151, %150 : vector<16x64xf32>
    %cst_93 = arith.constant 5.000000e-01 : f32
    %153 = vector.broadcast %cst_93 : f32 to vector<16x64xf32>
    %154 = arith.mulf %153, %152 : vector<16x64xf32>
    %155 = arith.mulf %142, %154 : vector<16x64xf32>
    %cst_94 = arith.constant dense<0.000000e+00> : vector<16x32xf32>
    %156 = tpu.matmul %155, %138, %cst_94 {dimension_numbers = #tpu.dot_dimension_numbers<[1], [0], [0], [1], [0, 0, 1, 1], [], []>} : vector<16x64xf32>, vector<64x32xf32>, vector<16x32xf32> -> vector<16x32xf32>
    %157 = vector.broadcast %139 : vector<1x32xf32> to vector<16x32xf32>
    %158 = arith.addf %156, %157 : vector<16x32xf32>
    %c6_95 = arith.constant 6 : index
    %c0_96 = arith.constant 0 : index
    %159 = vector.load %arg3[%c6_95, %c0_96] : memref<24x96xf32, #tpu.memory_space<vmem>>, vector<1x32xf32>
    %c7_97 = arith.constant 7 : index
    %c0_98 = arith.constant 0 : index
    %160 = vector.load %arg3[%c7_97, %c0_98] : memref<24x96xf32, #tpu.memory_space<vmem>>, vector<1x32xf32>
    %161 = arith.addf %135, %158 : vector<16x32xf32>
    %cst_99 = arith.constant dense<0.000000e+00> : vector<16xf32>
    %162 = vector.multi_reduction <add>, %161, %cst_99 [1] : vector<16x32xf32> to vector<16xf32>
    %163 = vector.shape_cast %162 : vector<16xf32> to vector<16x1xf32>
    %cst_100 = arith.constant 3.200000e+01 : f32
    %164 = vector.broadcast %cst_100 : f32 to vector<16x1xf32>
    %165 = arith.divf %163, %164 : vector<16x1xf32>
    %166 = vector.broadcast %165 : vector<16x1xf32> to vector<16x32xf32>
    %167 = arith.subf %161, %166 : vector<16x32xf32>
    %168 = arith.mulf %167, %167 : vector<16x32xf32>
    %cst_101 = arith.constant dense<0.000000e+00> : vector<16xf32>
    %169 = vector.multi_reduction <add>, %168, %cst_101 [1] : vector<16x32xf32> to vector<16xf32>
    %170 = vector.shape_cast %169 : vector<16xf32> to vector<16x1xf32>
    %cst_102 = arith.constant 3.200000e+01 : f32
    %171 = vector.broadcast %cst_102 : f32 to vector<16x1xf32>
    %172 = arith.divf %170, %171 : vector<16x1xf32>
    %cst_103 = arith.constant 9.99999996E-13 : f32
    %173 = vector.broadcast %cst_103 : f32 to vector<16x1xf32>
    %174 = arith.addf %172, %173 : vector<16x1xf32>
    %175 = math.rsqrt %174 : vector<16x1xf32>
    %176 = vector.broadcast %165 : vector<16x1xf32> to vector<16x32xf32>
    %177 = arith.subf %161, %176 : vector<16x32xf32>
    %178 = vector.broadcast %175 : vector<16x1xf32> to vector<16x32xf32>
    %179 = arith.mulf %177, %178 : vector<16x32xf32>
    %180 = vector.broadcast %159 : vector<1x32xf32> to vector<16x32xf32>
    %181 = arith.mulf %179, %180 : vector<16x32xf32>
    %182 = vector.broadcast %160 : vector<1x32xf32> to vector<16x32xf32>
    %183 = arith.addf %181, %182 : vector<16x32xf32>
    %c0_104 = arith.constant 0 : index
    %c0_105 = arith.constant 0 : index
    %184 = vector.load %arg4[%c0_104, %c0_105] : memref<16x32xf32, #tpu.memory_space<vmem>>, vector<16x32xf32>
    tpu.vector_store %arg4[%c0_104, %c0_105], %183 {strides = array<i32>} : memref<16x32xf32, #tpu.memory_space<vmem>>, vector<16x32xf32>,
    return
  }
}

</mosaic_0001>

<llo_original>
// kernel: hf_encoder_forward.1
$region0: #{hf_encoder_forward.1}
  #allocation0 [shape = 'u32[]', space=smem, size = 0x4, offset = 0x4, fixed_abs, tag = 'smem constant byte address 0x4 - core index']
  #allocation1 [shape = 'u32[144,128]{1,0:T(1,128)}', space=vmem, size = 0x12000, scoped, tag = 'internal scratch']
  #allocation2 [shape = 'f32[16,32]{1,0:T(8,128)}', space=vmem, size = 0x2000, scoped, tag = 'scratch operand']
  #allocation3 [shape = 'f32[16,32]{1,0:T(8,128)}', space=vmem, size = 0x2000, scoped, tag = 'scratch operand']
  %s0 = inlined_call_operand.vmem [shape: s32[16], index: 0, kind: input, shape index: {}]
  %s1 = inlined_call_operand.vmem [shape: f32[100,32], index: 1, kind: input, shape index: {}]
  %s2 = inlined_call_operand.vmem [shape: f32[64,224], index: 2, kind: input, shape index: {}]
  %s3 = inlined_call_operand.hbm [shape: f32[24,96], index: 3, kind: input, shape index: {}]
  %s4 = inlined_call_operand.hbm [shape: f32[16,32], index: 4, kind: output, shape index: {}]
  %s5 = sld [smem:[#allocation0]]
  $region34: #{hf_encoder_forward.1} parent=0
    _
  %s7 = ssub.s32 1, %s5
  %s8 = scalar_select 0, %s7, %s5
  $region1: #{hf_encoder_forward.1} parent=0
    #allocation4 [shape = 'u8[512]{0}', space=smem, size = 0x200, scoped, tag = 'input window, operand 0, single buffered']
    #allocation5 [shape = 's32[1]{0}', space=sflag, size = 0x4, scoped, tag = 'scoped memory for hf_encoder_forward.1']
    #allocation6 [shape = 's32[1]{0}', space=sflag, size = 0x4, scoped, tag = 'scoped memory for hf_encoder_forward.1']
    #allocation7 [shape = 's32[1]{0}', space=sflag, size = 0x4, scoped, tag = 'scoped memory for hf_encoder_forward.1']
    #allocation8 [shape = 'u8[12288]{0}', space=vmem, size = 0x3000, scoped, tag = 'input window, operand 3, single buffered']
    #allocation9 [shape = 'u8[8192]{0}', space=vmem, size = 0x2000, scoped, tag = 'output window, operand 0, single buffered']
    %9 = vsyncpa [#allocation7], 0
    %10 = vsyncpa [#allocation5], 0
    %11 = vsyncpa [#allocation6], 0
    // Predicated region
    $region2: #{hf_encoder_forward.1} parent=1 // pred_check
      _
    $region3: #{hf_encoder_forward.1} parent=1 // pred_check_branch
      %13 = sbr.rel (0) target = $region5
    $region4: #{hf_encoder_forward.1} parent=1 // pred_region
      %s15 = ssub.s32 16, 16
      %16 = vsyncadd [#allocation7], %s15
      %s18 = sshll.u32 %s0, 4
      %s19 = int_to_ptr.vmem [resolvable:$true] %s18
      %21 = dma.vmem_to_smem %s19, 16, [#allocation4], [#allocation7]
    $region5: #{hf_encoder_forward.1} parent=1 // pred_fallthru
      _
    // Predicated region
    $region6: #{hf_encoder_forward.1} parent=1 // pred_check
      _
    $region7: #{hf_encoder_forward.1} parent=1 // pred_check_branch
      %23 = sbr.rel (0) target = $region9
    $region8: #{hf_encoder_forward.1} parent=1 // pred_region
      _
    $region9: #{hf_encoder_forward.1} parent=1 // pred_fallthru
      _
    // Predicated region
    $region10: #{hf_encoder_forward.1} parent=1 // pred_check
      _
    $region11: #{hf_encoder_forward.1} parent=1 // pred_check_branch
      %25 = sbr.rel (0) target = $region13
    $region12: #{hf_encoder_forward.1} parent=1 // pred_region
      _
    $region13: #{hf_encoder_forward.1} parent=1 // pred_fallthru
      _
    // Predicated region
    $region14: #{hf_encoder_forward.1} parent=1 // pred_check
      _
    $region15: #{hf_encoder_forward.1} parent=1 // pred_check_branch
      %27 = sbr.rel (0) target = $region17
    $region16: #{hf_encoder_forward.1} parent=1 // pred_region
      %s29 = ssub.s32 384, 384
      %30 = vsyncadd [#allocation5], %s29
      %s31 = sshll.u32 [#allocation8], 4
      %s32 = int_to_ptr.vmem [resolvable:$true] %s31
      %37 = dma.hbm_to_vmem [thread:$0]  %s3, 384, %s32, [#allocation5], 128, 128, 8
    $region17: #{hf_encoder_forward.1} parent=1 // pred_fallthru
      _
    // Predicated region
    $region18: #{hf_encoder_forward.1} parent=1 // pred_check
      _
    $region19: #{hf_encoder_forward.1} parent=1 // pred_check_branch
      %39 = sbr.rel (0) target = $region21
    $region20: #{hf_encoder_forward.1} parent=1 // pred_region
      %40 = dma.done [#allocation7], 16
    $region21: #{hf_encoder_forward.1} parent=1 // pred_fallthru
      _
    // Predicated region
    $region22: #{hf_encoder_forward.1} parent=1 // pred_check
      _
    $region23: #{hf_encoder_forward.1} parent=1 // pred_check_branch
      %42 = sbr.rel (0) target = $region25
    $region24: #{hf_encoder_forward.1} parent=1 // pred_region
      %43 = dma.done [#allocation5], 384
    $region25: #{hf_encoder_forward.1} parent=1 // pred_fallthru
      _
    %44 = sfence
    %s45 = sld [smem:[#allocation4]]
    %s46 = scalar_lea.vmem %s1, %s45
    %v47 = vld [vmem:[%s46] sm:$0x1]
    %vm48 = vcmask 253952
    %49 = vst.msk [vmem:[#allocation2] sm:$0x1] %vm48, %v47
    %s50 = sld [smem:[#allocation4 + $0x1]]
    %s51 = scalar_lea.vmem %s1, %s50
    %v52 = vld [vmem:[%s51] sm:$0x1]
    %53 = vst.msk [vmem:[#allocation2 + $0x1] sm:$0x1] %vm48, %v52
    %s54 = sld [smem:[#allocation4 + $0x2]]
    %s55 = scalar_lea.vmem %s1, %s54
    %v56 = vld [vmem:[%s55] sm:$0x1]
    %57 = vst.msk [vmem:[#allocation2 + $0x2] sm:$0x1] %vm48, %v56
    %s58 = sld [smem:[#allocation4 + $0x3]]
    %s59 = scalar_lea.vmem %s1, %s58
    %v60 = vld [vmem:[%s59] sm:$0x1]
    %61 = vst.msk [vmem:[#allocation2 + $0x3] sm:$0x1] %vm48, %v60
    %s62 = sld [smem:[#allocation4 + $0x4]]
    %s63 = scalar_lea.vmem %s1, %s62
    %v64 = vld [vmem:[%s63] sm:$0x1]
    %65 = vst.msk [vmem:[#allocation2 + $0x4] sm:$0x1] %vm48, %v64
    %s66 = sld [smem:[#allocation4 + $0x5]]
    %s67 = scalar_lea.vmem %s1, %s66
    %v68 = vld [vmem:[%s67] sm:$0x1]
    %69 = vst.msk [vmem:[#allocation2 + $0x5] sm:$0x1] %vm48, %v68
    %s70 = sld [smem:[#allocation4 + $0x6]]
    %s71 = scalar_lea.vmem %s1, %s70
    %v72 = vld [vmem:[%s71] sm:$0x1]
    %73 = vst.msk [vmem:[#allocation2 + $0x6] sm:$0x1] %vm48, %v72
    %s74 = sld [smem:[#allocation4 + $0x7]]
    %s75 = scalar_lea.vmem %s1, %s74
    %v76 = vld [vmem:[%s75] sm:$0x1]
    %77 = vst.msk [vmem:[#allocation2 + $0x7] sm:$0x1] %vm48, %v76
    %s78 = sld [smem:[#allocation4 + $0x8]]
    %s79 = scalar_lea.vmem %s1, %s78
    %v80 = vld [vmem:[%s79] sm:$0x1]
    %81 = vst.msk [vmem:[#allocation2 + $0x8] sm:$0x1] %vm48, %v80
    %s82 = sld [smem:[#allocation4 + $0x9]]
    %s83 = scalar_lea.vmem %s1, %s82
    %v84 = vld [vmem:[%s83] sm:$0x1]
    %85 = vst.msk [vmem:[#allocation2 + $0x9] sm:$0x1] %vm48, %v84
    %s86 = sld [smem:[#allocation4 + $0xa]]
    %s87 = scalar_lea.vmem %s1, %s86
    %v88 = vld [vmem:[%s87] sm:$0x1]
    %89 = vst.msk [vmem:[#allocation2 + $0xa] sm:$0x1] %vm48, %v88
    %s90 = sld [smem:[#allocation4 + $0xb]]
    %s91 = scalar_lea.vmem %s1, %s90
    %v92 = vld [vmem:[%s91] sm:$0x1]
    %93 = vst.msk [vmem:[#allocation2 + $0xb] sm:$0x1] %vm48, %v92
    %s94 = sld [smem:[#allocation4 + $0xc]]
    %s95 = scalar_lea.vmem %s1, %s94
    %v96 = vld [vmem:[%s95] sm:$0x1]
    %97 = vst.msk [vmem:[#allocation2 + $0xc] sm:$0x1] %vm48, %v96
    %s98 = sld [smem:[#allocation4 + $0xd]]
    %s99 = scalar_lea.vmem %s1, %s98
    %v100 = vld [vmem:[%s99] sm:$0x1]
    %101 = vst.msk [vmem:[#allocation2 + $0xd] sm:$0x1] %vm48, %v100
    %s102 = sld [smem:[#allocation4 + $0xe]]
    %s103 = scalar_lea.vmem %s1, %s102
    %v104 = vld [vmem:[%s103] sm:$0x1]
    %105 = vst.msk [vmem:[#allocation2 + $0xe] sm:$0x1] %vm48, %v104
    %s106 = sld [smem:[#allocation4 + $0xf]]
    %s107 = scalar_lea.vmem %s1, %s106
    %v108 = vld [vmem:[%s107] sm:$0x1]
    %109 = vst.msk [vmem:[#allocation2 + $0xf] sm:$0x1] %vm48, %v108
    %v110 = vld [vmem:[#allocation8 + $0x8] sm:$0xff]
    %v111 = vld [vmem:[#allocation8 + $0x10] sm:$0xff]
    %v112 = vld [vmem:[#allocation2] sm:$0xff]
    %v113 = vld [vmem:[#allocation2 + $0x8] sm:$0xff]
    %v114 = vadd.f32 %v112, %v110
    %v115 = vadd.f32 %v113, %v111
    %v116 = vld [vmem:[%s2] sm:$0xff]
    %v117 = vld [vmem:[%s2 + $0x10] sm:$0xff]
    %v118 = vld [vmem:[%s2 + $0x20] sm:$0xff]
    %v119 = vld [vmem:[%s2 + $0x30] sm:$0xff]
    %v120 = vld [vmem:[#allocation8] sm:$0x1]
    %v121 = vlaneseq
    %v122 = vshrl.u32 %v121, 7
    %v123 = vsub.s32 0, %v122
    %v124 = vrot.slane %v120, %v123
    %vm125 = vcmask 261120
    %v127 = vsel %vm125, %v114, 0
    %v130 = vsel %vm125, %v115, 0
    %132 = vmatprep.subr.mxu0 0.0
    %133 = vmatpush1.msra.mxu0 0.0
    %134 = vmatprep.subr.mxu0 0.0
    %135 = vmatpush1.msra.mxu0 0.0
    %136 = vmatprep.subr.mxu0 0.0
    %137 = vmatpush1.msra.mxu0 0.0
    %138 = vmatprep.subr.mxu0 0.0
    %139 = vmatpush1.msra.mxu0 0.0
    %140 = vmatprep.subr.mxu0 0.0
    %141 = vmatpush1.msra.mxu0 0.0
    %142 = vmatprep.subr.mxu0 0.0
    %143 = vmatpush1.msra.mxu0 0.0
    %144 = vmatprep.subr.mxu0 0.0
    %145 = vmatpush1.msra.mxu0 0.0
    %146 = vmatprep.subr.mxu0 0.0
    %147 = vmatpush1.msra.mxu0 0.0
    %148 = vmatprep.subr.mxu0 0.0
    %149 = vmatpush1.msra.mxu0 0.0
    %150 = vmatprep.subr.mxu0 0.0
    %151 = vmatpush1.msra.mxu0 0.0
    %152 = vmatprep.subr.mxu0 0.0
    %153 = vmatpush1.msra.mxu0 0.0
    %154 = vmatprep.subr.mxu0 0.0
    %155 = vmatpush1.msra.mxu0 0.0
    %156 = vmatprep.subr.mxu0 0.0
    %157 = vmatpush1.msra.mxu0 %v119
    %158 = vmatprep.subr.mxu0 0.0
    %159 = vmatpush1.msra.mxu0 %v118
    %160 = vmatprep.subr.mxu0 0.0
    %161 = vmatpush1.msra.mxu0 %v117
    %162 = vmatprep.subr.mxu0 0.0
    %163 = vmatpush1.msra.mxu0 %v116
    %164 = vmatprep.subr.mxu0 0.0
    %165 = vmatpush2.msra.mxu0 0.0
    %166 = vmatprep.subr.mxu0 0.0
    %167 = vmatpush2.msra.mxu0 0.0
    %168 = vmatprep.subr.mxu0 0.0
    %169 = vmatpush2.msra.mxu0 0.0
    %170 = vmatprep.subr.mxu0 0.0
    %171 = vmatpush2.msra.mxu0 0.0
    %172 = vmatprep.subr.mxu0 0.0
    %173 = vmatpush2.msra.mxu0 0.0
    %174 = vmatprep.subr.mxu0 0.0
    %175 = vmatpush2.msra.mxu0 0.0
    %176 = vmatprep.subr.mxu0 0.0
    %177 = vmatpush2.msra.mxu0 0.0
    %178 = vmatprep.subr.mxu0 0.0
    %179 = vmatpush2.msra.mxu0 0.0
    %180 = vmatprep.subr.mxu0 0.0
    %181 = vmatpush2.msra.mxu0 0.0
    %182 = vmatprep.subr.mxu0 0.0
    %183 = vmatpush2.msra.mxu0 0.0
    %184 = vmatprep.subr.mxu0 0.0
    %185 = vmatpush2.msra.mxu0 0.0
    %186 = vmatprep.subr.mxu0 0.0
    %187 = vmatpush2.msra.mxu0 0.0
    %188 = vmatprep.subr.mxu0 0.0
    %189 = vmatpush2.msra.mxu0 0.0
    %190 = vmatprep.subr.mxu0 0.0
    %191 = vmatpush2.msra.mxu0 0.0
    %192 = vmatprep.subr.mxu0 0.0
    %193 = vmatpush2.msra.mxu0 0.0
    %194 = vmatprep.subr.mxu0 0.0
    %195 = vmatpush2.msra.mxu0 0.0
    %196 = vmatprep.mubr.f32.mxu0 0.0
    %197 = vmatmul.mubr.f32.gmra.mxu0 %v127
    %v198 = vpop.f32.mrf.mxu0
    %v199 = vadd.f32 %v124, %v198
    %v200 = vpop.f32.mrf.mxu0
    %201 = vmatprep.mubr.f32.mxu0 0.0
    %202 = vmatmul.mubr.f32.gmra.mxu0 %v130
    %v203 = vpop.f32.mrf.mxu0
    %v204 = vadd.f32 %v124, %v203
    %v205 = vpop.f32.mrf.mxu0
    %206 = vdwg.mxu0
    %209 = vrot.lane.b32.xlu0 %v199, 96
    %v210 = vpop.permute.xlu0 %209
    %211 = vrot.lane.b32.xlu0 %v204, 96
    %v212 = vpop.permute.xlu0 %211
    %215 = vrot.lane.b32.xlu0 %v110, 96
    %v216 = vpop.permute.xlu0 %215
    %217 = vrot.lane.b32.xlu0 %v111, 96
    %v218 = vpop.permute.xlu0 %217
    %vm221 = vcmask 130048
    %v222 = vsel %vm221, %v199, 0
    %v224 = vsel %vm221, %v204, 0
    %v226 = vsel %vm221, %v210, 0
    %v228 = vsel %vm221, %v212, 0
    %230 = vmatprep.subr.mxu0 0.0
    %231 = vmatpush1.xpose.msra.mxu0 0.0
    %232 = vmatprep.subr.mxu0 0.0
    %233 = vmatpush1.xpose.msra.mxu0 0.0
    %234 = vmatprep.subr.mxu0 0.0
    %235 = vmatpush1.xpose.msra.mxu0 0.0
    %236 = vmatprep.subr.mxu0 0.0
    %237 = vmatpush1.xpose.msra.mxu0 0.0
    %238 = vmatprep.subr.mxu0 0.0
    %239 = vmatpush1.xpose.msra.mxu0 0.0
    %240 = vmatprep.subr.mxu0 0.0
    %241 = vmatpush1.xpose.msra.mxu0 0.0
    %242 = vmatprep.subr.mxu0 0.0
    %243 = vmatpush1.xpose.msra.mxu0 0.0
    %244 = vmatprep.subr.mxu0 0.0
    %245 = vmatpush1.xpose.msra.mxu0 0.0
    %246 = vmatprep.subr.mxu0 0.0
    %247 = vmatpush1.xpose.msra.mxu0 0.0
    %248 = vmatprep.subr.mxu0 0.0
    %249 = vmatpush1.xpose.msra.mxu0 0.0
    %250 = vmatprep.subr.mxu0 0.0
    %251 = vmatpush1.xpose.msra.mxu0 0.0
    %252 = vmatprep.subr.mxu0 0.0
    %253 = vmatpush1.xpose.msra.mxu0 0.0
    %254 = vmatprep.subr.mxu0 0.0
    %255 = vmatpush1.xpose.msra.mxu0 0.0
    %256 = vmatprep.subr.mxu0 0.0
    %257 = vmatpush1.xpose.msra.mxu0 0.0
    %258 = vmatprep.subr.mxu0 0.0
    %259 = vmatpush1.xpose.msra.mxu0 %v228
    %260 = vmatprep.subr.mxu0 0.0
    %261 = vmatpush1.xpose.msra.mxu0 %v226
    %262 = vmatprep.subr.mxu0 0.0
    %263 = vmatpush2.xpose.msra.mxu0 0.0
    %264 = vmatprep.subr.mxu0 0.0
    %265 = vmatpush2.xpose.msra.mxu0 0.0
    %266 = vmatprep.subr.mxu0 0.0
    %267 = vmatpush2.xpose.msra.mxu0 0.0
    %268 = vmatprep.subr.mxu0 0.0
    %269 = vmatpush2.xpose.msra.mxu0 0.0
    %270 = vmatprep.subr.mxu0 0.0
    %271 = vmatpush2.xpose.msra.mxu0 0.0
    %272 = vmatprep.subr.mxu0 0.0
    %273 = vmatpush2.xpose.msra.mxu0 0.0
    %274 = vmatprep.subr.mxu0 0.0
    %275 = vmatpush2.xpose.msra.mxu0 0.0
    %276 = vmatprep.subr.mxu0 0.0
    %277 = vmatpush2.xpose.msra.mxu0 0.0
    %278 = vmatprep.subr.mxu0 0.0
    %279 = vmatpush2.xpose.msra.mxu0 0.0
    %280 = vmatprep.subr.mxu0 0.0
    %281 = vmatpush2.xpose.msra.mxu0 0.0
    %282 = vmatprep.subr.mxu0 0.0
    %283 = vmatpush2.xpose.msra.mxu0 0.0
    %284 = vmatprep.subr.mxu0 0.0
    %285 = vmatpush2.xpose.msra.mxu0 0.0
    %286 = vmatprep.subr.mxu0 0.0
    %287 = vmatpush2.xpose.msra.mxu0 0.0
    %288 = vmatprep.subr.mxu0 0.0
    %289 = vmatpush2.xpose.msra.mxu0 0.0
    %290 = vmatprep.subr.mxu0 0.0
    %291 = vmatpush2.xpose.msra.mxu0 0.0
    %292 = vmatprep.subr.mxu0 0.0
    %293 = vmatpush2.xpose.msra.mxu0 0.0
    %294 = vmatprep.mubr.f32.mxu0 0.0
    %295 = vmatmul.mubr.f32.gmra.mxu0 %v222
    %v296 = vpop.f32.mrf.mxu0
    %v297 = vadd.f32 %v216, %v296
    %v298 = vpop.f32.mrf.mxu0
    %299 = vmatprep.mubr.f32.mxu0 0.0
    %300 = vmatmul.mubr.f32.gmra.mxu0 %v224
    %v301 = vpop.f32.mrf.mxu0
    %v302 = vadd.f32 %v218, %v301
    %v303 = vpop.f32.mrf.mxu0
    %304 = vdwg.mxu0
    %v305 = vsel %vm221, %v297, -inf
    %306 = vmax.xlane.f32.xlu0 %v305
    %v307 = vpop.xlane.xlu0 %306
    %v308 = vsel %vm221, %v302, -inf
    %309 = vmax.xlane.f32.xlu0 %v308
    %v310 = vpop.xlane.xlu0 %309
    %v311 = vsub.f32 %v297, %v307
    %v312 = vsub.f32 %v302, %v310
    %v313 = vmul.f32 %v311, 1.442695
    %v314 = vpow.pop %v313
    %v315 = vmul.f32 %v312, 1.442695
    %v316 = vpow.pop %v315
    %v317 = vsel %vm221, %v314, 0.0
    %318 = vadd.xlane.f32.xlu0 %v317
    %v319 = vpop.xlane.xlu0 %318
    %v320 = vsel %vm221, %v316, 0.0
    %321 = vadd.xlane.f32.xlu0 %v320
    %v322 = vpop.xlane.xlu0 %321
    %v323 = vrcp.pop %v319
    %v324 = vmul.f32 %v314, %v323
    %v325 = vrcp.pop %v322
    %v326 = vmul.f32 %v316, %v325
    %327 = vrot.lane.b32.xlu0 %v199, 64
    %v328 = vpop.permute.xlu0 %327
    %329 = vrot.lane.b32.xlu0 %v204, 64
    %v330 = vpop.permute.xlu0 %329
    %v334 = vsel %vm221, %v324, 0
    %v337 = vsel %vm221, %v326, 0
    %339 = vmatprep.subr.mxu0 0.0
    %340 = vmatpush1.msra.mxu0 0.0
    %341 = vmatprep.subr.mxu0 0.0
    %342 = vmatpush1.msra.mxu0 0.0
    %343 = vmatprep.subr.mxu0 0.0
    %344 = vmatpush1.msra.mxu0 0.0
    %345 = vmatprep.subr.mxu0 0.0
    %346 = vmatpush1.msra.mxu0 0.0
    %347 = vmatprep.subr.mxu0 0.0
    %348 = vmatpush1.msra.mxu0 0.0
    %349 = vmatprep.subr.mxu0 0.0
    %350 = vmatpush1.msra.mxu0 0.0
    %351 = vmatprep.subr.mxu0 0.0
    %352 = vmatpush1.msra.mxu0 0.0
    %353 = vmatprep.subr.mxu0 0.0
    %354 = vmatpush1.msra.mxu0 0.0
    %355 = vmatprep.subr.mxu0 0.0
    %356 = vmatpush1.msra.mxu0 0.0
    %357 = vmatprep.subr.mxu0 0.0
    %358 = vmatpush1.msra.mxu0 0.0
    %359 = vmatprep.subr.mxu0 0.0
    %360 = vmatpush1.msra.mxu0 0.0
    %361 = vmatprep.subr.mxu0 0.0
    %362 = vmatpush1.msra.mxu0 0.0
    %363 = vmatprep.subr.mxu0 0.0
    %364 = vmatpush1.msra.mxu0 0.0
    %365 = vmatprep.subr.mxu0 0.0
    %366 = vmatpush1.msra.mxu0 0.0
    %367 = vmatprep.subr.mxu0 0.0
    %368 = vmatpush1.msra.mxu0 %v330
    %369 = vmatprep.subr.mxu0 0.0
    %370 = vmatpush1.msra.mxu0 %v328
    %371 = vmatprep.subr.mxu0 0.0
    %372 = vmatpush2.msra.mxu0 0.0
    %373 = vmatprep.subr.mxu0 0.0
    %374 = vmatpush2.msra.mxu0 0.0
    %375 = vmatprep.subr.mxu0 0.0
    %376 = vmatpush2.msra.mxu0 0.0
    %377 = vmatprep.subr.mxu0 0.0
    %378 = vmatpush2.msra.mxu0 0.0
    %379 = vmatprep.subr.mxu0 0.0
    %380 = vmatpush2.msra.mxu0 0.0
    %381 = vmatprep.subr.mxu0 0.0
    %382 = vmatpush2.msra.mxu0 0.0
    %383 = vmatprep.subr.mxu0 0.0
    %384 = vmatpush2.msra.mxu0 0.0
    %385 = vmatprep.subr.mxu0 0.0
    %386 = vmatpush2.msra.mxu0 0.0
    %387 = vmatprep.subr.mxu0 0.0
    %388 = vmatpush2.msra.mxu0 0.0
    %389 = vmatprep.subr.mxu0 0.0
    %390 = vmatpush2.msra.mxu0 0.0
    %391 = vmatprep.subr.mxu0 0.0
    %392 = vmatpush2.msra.mxu0 0.0
    %393 = vmatprep.subr.mxu0 0.0
    %394 = vmatpush2.msra.mxu0 0.0
    %395 = vmatprep.subr.mxu0 0.0
    %396 = vmatpush2.msra.mxu0 0.0
    %397 = vmatprep.subr.mxu0 0.0
    %398 = vmatpush2.msra.mxu0 0.0
    %399 = vmatprep.subr.mxu0 0.0
    %400 = vmatpush2.msra.mxu0 0.0
    %401 = vmatprep.subr.mxu0 0.0
    %402 = vmatpush2.msra.mxu0 0.0
    %403 = vmatprep.mubr.f32.mxu0 0.0
    %404 = vmatmul.mubr.f32.gmra.mxu0 %v334
    %v405 = vpop.f32.mrf.mxu0
    %v406 = vadd.f32 0.0, %v405
    %v407 = vpop.f32.mrf.mxu0
    %408 = vmatprep.mubr.f32.mxu0 0.0
    %409 = vmatmul.mubr.f32.gmra.mxu0 %v337
    %v410 = vpop.f32.mrf.mxu0
    %v411 = vadd.f32 0.0, %v410
    %v412 = vpop.f32.mrf.mxu0
    %413 = vdwg.mxu0
    %414 = vst.msk [vmem:[#allocation3] sm:$0xff] %vm221, %v406
    %415 = vst.msk [vmem:[#allocation3 + $0x8] sm:$0xff] %vm221, %v411
    %416 = vrot.lane.b32.xlu0 %v199, 112
    %v417 = vpop.permute.xlu0 %416
    %418 = vrot.lane.b32.xlu0 %v204, 112
    %v419 = vpop.permute.xlu0 %418
    %420 = vrot.lane.b32.xlu0 %v199, 80
    %v421 = vpop.permute.xlu0 %420
    %422 = vrot.lane.b32.xlu0 %v204, 80
    %v423 = vpop.permute.xlu0 %422
    %v424 = vsel %vm221, %v417, 0
    %v426 = vsel %vm221, %v419, 0
    %v428 = vsel %vm221, %v421, 0
    %v430 = vsel %vm221, %v423, 0
    %432 = vmatprep.subr.mxu0 0.0
    %433 = vmatpush1.xpose.msra.mxu0 0.0
    %434 = vmatprep.subr.mxu0 0.0
    %435 = vmatpush1.xpose.msra.mxu0 0.0
    %436 = vmatprep.subr.mxu0 0.0
    %437 = vmatpush1.xpose.msra.mxu0 0.0
    %438 = vmatprep.subr.mxu0 0.0
    %439 = vmatpush1.xpose.msra.mxu0 0.0
    %440 = vmatprep.subr.mxu0 0.0
    %441 = vmatpush1.xpose.msra.mxu0 0.0
    %442 = vmatprep.subr.mxu0 0.0
    %443 = vmatpush1.xpose.msra.mxu0 0.0
    %444 = vmatprep.subr.mxu0 0.0
    %445 = vmatpush1.xpose.msra.mxu0 0.0
    %446 = vmatprep.subr.mxu0 0.0
    %447 = vmatpush1.xpose.msra.mxu0 0.0
    %448 = vmatprep.subr.mxu0 0.0
    %449 = vmatpush1.xpose.msra.mxu0 0.0
    %450 = vmatprep.subr.mxu0 0.0
    %451 = vmatpush1.xpose.msra.mxu0 0.0
    %452 = vmatprep.subr.mxu0 0.0
    %453 = vmatpush1.xpose.msra.mxu0 0.0
    %454 = vmatprep.subr.mxu0 0.0
    %455 = vmatpush1.xpose.msra.mxu0 0.0
    %456 = vmatprep.subr.mxu0 0.0
    %457 = vmatpush1.xpose.msra.mxu0 0.0
    %458 = vmatprep.subr.mxu0 0.0
    %459 = vmatpush1.xpose.msra.mxu0 0.0
    %460 = vmatprep.subr.mxu0 0.0
    %461 = vmatpush1.xpose.msra.mxu0 %v430
    %462 = vmatprep.subr.mxu0 0.0
    %463 = vmatpush1.xpose.msra.mxu0 %v428
    %464 = vmatprep.subr.mxu0 0.0
    %465 = vmatpush2.xpose.msra.mxu0 0.0
    %466 = vmatprep.subr.mxu0 0.0
    %467 = vmatpush2.xpose.msra.mxu0 0.0
    %468 = vmatprep.subr.mxu0 0.0
    %469 = vmatpush2.xpose.msra.mxu0 0.0
    %470 = vmatprep.subr.mxu0 0.0
    %471 = vmatpush2.xpose.msra.mxu0 0.0
    %472 = vmatprep.subr.mxu0 0.0
    %473 = vmatpush2.xpose.msra.mxu0 0.0
    %474 = vmatprep.subr.mxu0 0.0
    %475 = vmatpush2.xpose.msra.mxu0 0.0
    %476 = vmatprep.subr.mxu0 0.0
    %477 = vmatpush2.xpose.msra.mxu0 0.0
    %478 = vmatprep.subr.mxu0 0.0
    %479 = vmatpush2.xpose.msra.mxu0 0.0
    %480 = vmatprep.subr.mxu0 0.0
    %481 = vmatpush2.xpose.msra.mxu0 0.0
    %482 = vmatprep.subr.mxu0 0.0
    %483 = vmatpush2.xpose.msra.mxu0 0.0
    %484 = vmatprep.subr.mxu0 0.0
    %485 = vmatpush2.xpose.msra.mxu0 0.0
    %486 = vmatprep.subr.mxu0 0.0
    %487 = vmatpush2.xpose.msra.mxu0 0.0
    %488 = vmatprep.subr.mxu0 0.0
    %489 = vmatpush2.xpose.msra.mxu0 0.0
    %490 = vmatprep.subr.mxu0 0.0
    %491 = vmatpush2.xpose.msra.mxu0 0.0
    %492 = vmatprep.subr.mxu0 0.0
    %493 = vmatpush2.xpose.msra.mxu0 0.0
    %494 = vmatprep.subr.mxu0 0.0
    %495 = vmatpush2.xpose.msra.mxu0 0.0
    %496 = vmatprep.mubr.f32.mxu0 0.0
    %497 = vmatmul.mubr.f32.gmra.mxu0 %v424
    %v498 = vpop.f32.mrf.mxu0
    %v499 = vadd.f32 %v216, %v498
    %v500 = vpop.f32.mrf.mxu0
    %501 = vmatprep.mubr.f32.mxu0 0.0
    %502 = vmatmul.mubr.f32.gmra.mxu0 %v426
    %v503 = vpop.f32.mrf.mxu0
    %v504 = vadd.f32 %v218, %v503
    %v505 = vpop.f32.mrf.mxu0
    %506 = vdwg.mxu0
    %v507 = vsel %vm221, %v499, -inf
    %508 = vmax.xlane.f32.xlu0 %v507
    %v509 = vpop.xlane.xlu0 %508
    %v510 = vsel %vm221, %v504, -inf
    %511 = vmax.xlane.f32.xlu0 %v510
    %v512 = vpop.xlane.xlu0 %511
    %v513 = vsub.f32 %v499, %v509
    %v514 = vsub.f32 %v504, %v512
    %v515 = vmul.f32 %v513, 1.442695
    %v516 = vpow.pop %v515
    %v517 = vmul.f32 %v514, 1.442695
    %v518 = vpow.pop %v517
    %v519 = vsel %vm221, %v516, 0.0
    %520 = vadd.xlane.f32.xlu0 %v519
    %v521 = vpop.xlane.xlu0 %520
    %v522 = vsel %vm221, %v518, 0.0
    %523 = vadd.xlane.f32.xlu0 %v522
    %v524 = vpop.xlane.xlu0 %523
    %v525 = vrcp.pop %v521
    %v526 = vmul.f32 %v516, %v525
    %v527 = vrcp.pop %v524
    %v528 = vmul.f32 %v518, %v527
    %529 = vrot.lane.b32.xlu0 %v199, 48
    %v530 = vpop.permute.xlu0 %529
    %531 = vrot.lane.b32.xlu0 %v204, 48
    %v532 = vpop.permute.xlu0 %531
    %v536 = vsel %vm221, %v526, 0
    %v539 = vsel %vm221, %v528, 0
    %541 = vmatprep.subr.mxu0 0.0
    %542 = vmatpush1.msra.mxu0 0.0
    %543 = vmatprep.subr.mxu0 0.0
    %544 = vmatpush1.msra.mxu0 0.0
    %545 = vmatprep.subr.mxu0 0.0
    %546 = vmatpush1.msra.mxu0 0.0
    %547 = vmatprep.subr.mxu0 0.0
    %548 = vmatpush1.msra.mxu0 0.0
    %549 = vmatprep.subr.mxu0 0.0
    %550 = vmatpush1.msra.mxu0 0.0
    %551 = vmatprep.subr.mxu0 0.0
    %552 = vmatpush1.msra.mxu0 0.0
    %553 = vmatprep.subr.mxu0 0.0
    %554 = vmatpush1.msra.mxu0 0.0
    %555 = vmatprep.subr.mxu0 0.0
    %556 = vmatpush1.msra.mxu0 0.0
    %557 = vmatprep.subr.mxu0 0.0
    %558 = vmatpush1.msra.mxu0 0.0
    %559 = vmatprep.subr.mxu0 0.0
    %560 = vmatpush1.msra.mxu0 0.0
    %561 = vmatprep.subr.mxu0 0.0
    %562 = vmatpush1.msra.mxu0 0.0
    %563 = vmatprep.subr.mxu0 0.0
    %564 = vmatpush1.msra.mxu0 0.0
    %565 = vmatprep.subr.mxu0 0.0
    %566 = vmatpush1.msra.mxu0 0.0
    %567 = vmatprep.subr.mxu0 0.0
    %568 = vmatpush1.msra.mxu0 0.0
    %569 = vmatprep.subr.mxu0 0.0
    %570 = vmatpush1.msra.mxu0 %v532
    %571 = vmatprep.subr.mxu0 0.0
    %572 = vmatpush1.msra.mxu0 %v530
    %573 = vmatprep.subr.mxu0 0.0
    %574 = vmatpush2.msra.mxu0 0.0
    %575 = vmatprep.subr.mxu0 0.0
    %576 = vmatpush2.msra.mxu0 0.0
    %577 = vmatprep.subr.mxu0 0.0
    %578 = vmatpush2.msra.mxu0 0.0
    %579 = vmatprep.subr.mxu0 0.0
    %580 = vmatpush2.msra.mxu0 0.0
    %581 = vmatprep.subr.mxu0 0.0
    %582 = vmatpush2.msra.mxu0 0.0
    %583 = vmatprep.subr.mxu0 0.0
    %584 = vmatpush2.msra.mxu0 0.0
    %585 = vmatprep.subr.mxu0 0.0
    %586 = vmatpush2.msra.mxu0 0.0
    %587 = vmatprep.subr.mxu0 0.0
    %588 = vmatpush2.msra.mxu0 0.0
    %589 = vmatprep.subr.mxu0 0.0
    %590 = vmatpush2.msra.mxu0 0.0
    %591 = vmatprep.subr.mxu0 0.0
    %592 = vmatpush2.msra.mxu0 0.0
    %593 = vmatprep.subr.mxu0 0.0
    %594 = vmatpush2.msra.mxu0 0.0
    %595 = vmatprep.subr.mxu0 0.0
    %596 = vmatpush2.msra.mxu0 0.0
    %597 = vmatprep.subr.mxu0 0.0
    %598 = vmatpush2.msra.mxu0 0.0
    %599 = vmatprep.subr.mxu0 0.0
    %600 = vmatpush2.msra.mxu0 0.0
    %601 = vmatprep.subr.mxu0 0.0
    %602 = vmatpush2.msra.mxu0 0.0
    %603 = vmatprep.subr.mxu0 0.0
    %604 = vmatpush2.msra.mxu0 0.0
    %605 = vmatprep.mubr.f32.mxu0 0.0
    %606 = vmatmul.mubr.f32.gmra.mxu0 %v536
    %v607 = vpop.f32.mrf.mxu0
    %v608 = vadd.f32 0.0, %v607
    %v609 = vpop.f32.mrf.mxu0
    %610 = vmatprep.mubr.f32.mxu0 0.0
    %611 = vmatmul.mubr.f32.gmra.mxu0 %v539
    %v612 = vpop.f32.mrf.mxu0
    %v613 = vadd.f32 0.0, %v612
    %v614 = vpop.f32.mrf.mxu0
    %615 = vdwg.mxu0
    %618 = vrot.lane.b32.xlu0 %v608, 16
    %v619 = vpop.permute.xlu0 %618
    %620 = vrot.lane.b32.xlu0 %v613, 16
    %v621 = vpop.permute.xlu0 %620
    %vm624 = vcmask 261248
    %625 = vst.msk [vmem:[#allocation3] sm:$0xff] %vm624, %v619
    %626 = vst.msk [vmem:[#allocation3 + $0x8] sm:$0xff] %vm624, %v621
    %v627 = vld [vmem:[%s2] sm:$0xff]
    %v628 = vld [vmem:[%s2 + $0x10] sm:$0xff]
    %v629 = vld [vmem:[%s2 + $0x20] sm:$0xff]
    %v630 = vld [vmem:[%s2 + $0x30] sm:$0xff]
    %v631 = vld [vmem:[#allocation8 + $0x1] sm:$0x1]
    %v632 = vld [vmem:[#allocation3] sm:$0xff]
    %v633 = vld [vmem:[#allocation3 + $0x8] sm:$0xff]
    %v634 = vlaneseq
    %v635 = vshrl.u32 %v634, 7
    %v636 = vsub.s32 0, %v635
    %v637 = vrot.slane %v631, %v636
    %642 = vrot.lane.b32.xlu0 %v627, 32
    %v643 = vpop.permute.xlu0 %642
    %644 = vrot.lane.b32.xlu0 %v628, 32
    %v645 = vpop.permute.xlu0 %644
    %646 = vrot.lane.b32.xlu0 %v629, 32
    %v647 = vpop.permute.xlu0 %646
    %648 = vrot.lane.b32.xlu0 %v630, 32
    %v649 = vpop.permute.xlu0 %648
    %v655 = vsel %vm125, %v632, 0
    %v658 = vsel %vm125, %v633, 0
    %660 = vmatprep.subr.mxu0 0.0
    %661 = vmatpush1.msra.mxu0 0.0
    %662 = vmatprep.subr.mxu0 0.0
    %663 = vmatpush1.msra.mxu0 0.0
    %664 = vmatprep.subr.mxu0 0.0
    %665 = vmatpush1.msra.mxu0 0.0
    %666 = vmatprep.subr.mxu0 0.0
    %667 = vmatpush1.msra.mxu0 0.0
    %668 = vmatprep.subr.mxu0 0.0
    %669 = vmatpush1.msra.mxu0 0.0
    %670 = vmatprep.subr.mxu0 0.0
    %671 = vmatpush1.msra.mxu0 0.0
    %672 = vmatprep.subr.mxu0 0.0
    %673 = vmatpush1.msra.mxu0 0.0
    %674 = vmatprep.subr.mxu0 0.0
    %675 = vmatpush1.msra.mxu0 0.0
    %676 = vmatprep.subr.mxu0 0.0
    %677 = vmatpush1.msra.mxu0 0.0
    %678 = vmatprep.subr.mxu0 0.0
    %679 = vmatpush1.msra.mxu0 0.0
    %680 = vmatprep.subr.mxu0 0.0
    %681 = vmatpush1.msra.mxu0 0.0
    %682 = vmatprep.subr.mxu0 0.0
    %683 = vmatpush1.msra.mxu0 0.0
    %684 = vmatprep.subr.mxu0 0.0
    %685 = vmatpush1.msra.mxu0 %v649
    %686 = vmatprep.subr.mxu0 0.0
    %687 = vmatpush1.msra.mxu0 %v647
    %688 = vmatprep.subr.mxu0 0.0
    %689 = vmatpush1.msra.mxu0 %v645
    %690 = vmatprep.subr.mxu0 0.0
    %691 = vmatpush1.msra.mxu0 %v643
    %692 = vmatprep.subr.mxu0 0.0
    %693 = vmatpush2.msra.mxu0 0.0
    %694 = vmatprep.subr.mxu0 0.0
    %695 = vmatpush2.msra.mxu0 0.0
    %696 = vmatprep.subr.mxu0 0.0
    %697 = vmatpush2.msra.mxu0 0.0
    %698 = vmatprep.subr.mxu0 0.0
    %699 = vmatpush2.msra.mxu0 0.0
    %700 = vmatprep.subr.mxu0 0.0
    %701 = vmatpush2.msra.mxu0 0.0
    %702 = vmatprep.subr.mxu0 0.0
    %703 = vmatpush2.msra.mxu0 0.0
    %704 = vmatprep.subr.mxu0 0.0
    %705 = vmatpush2.msra.mxu0 0.0
    %706 = vmatprep.subr.mxu0 0.0
    %707 = vmatpush2.msra.mxu0 0.0
    %708 = vmatprep.subr.mxu0 0.0
    %709 = vmatpush2.msra.mxu0 0.0
    %710 = vmatprep.subr.mxu0 0.0
    %711 = vmatpush2.msra.mxu0 0.0
    %712 = vmatprep.subr.mxu0 0.0
    %713 = vmatpush2.msra.mxu0 0.0
    %714 = vmatprep.subr.mxu0 0.0
    %715 = vmatpush2.msra.mxu0 0.0
    %716 = vmatprep.subr.mxu0 0.0
    %717 = vmatpush2.msra.mxu0 0.0
    %718 = vmatprep.subr.mxu0 0.0
    %719 = vmatpush2.msra.mxu0 0.0
    %720 = vmatprep.subr.mxu0 0.0
    %721 = vmatpush2.msra.mxu0 0.0
    %722 = vmatprep.subr.mxu0 0.0
    %723 = vmatpush2.msra.mxu0 0.0
    %724 = vmatprep.mubr.f32.mxu0 0.0
    %725 = vmatmul.mubr.f32.gmra.mxu0 %v655
    %v726 = vpop.f32.mrf.mxu0
    %v727 = vadd.f32 %v637, %v726
    %v728 = vpop.f32.mrf.mxu0
    %729 = vmatprep.mubr.f32.mxu0 0.0
    %730 = vmatmul.mubr.f32.gmra.mxu0 %v658
    %v731 = vpop.f32.mrf.mxu0
    %v732 = vadd.f32 %v637, %v731
    %v733 = vpop.f32.mrf.mxu0
    %734 = vdwg.mxu0
    %v735 = vld [vmem:[#allocation8 + $0x2] sm:$0x1]
    %v736 = vld [vmem:[#allocation8 + $0x3] sm:$0x1]
    %v737 = vadd.f32 %v114, %v727
    %v738 = vadd.f32 %v115, %v732
    %v739 = vsel %vm125, %v737, 0.0
    %740 = vadd.xlane.f32.xlu0 %v739
    %v741 = vpop.xlane.xlu0 %740
    %v742 = vsel %vm125, %v738, 0.0
    %743 = vadd.xlane.f32.xlu0 %v742
    %v744 = vpop.xlane.xlu0 %743
    %v745 = vrcp.pop 32.0
    %v746 = vmul.f32 %v741, %v745
    %v747 = vmul.f32 %v744, %v745
    %v748 = vsub.f32 %v737, %v746
    %v749 = vsub.f32 %v738, %v747
    %v750 = vmul.f32 %v748, %v748
    %v751 = vmul.f32 %v749, %v749
    %v752 = vsel %vm125, %v750, 0.0
    %753 = vadd.xlane.f32.xlu0 %v752
    %v754 = vpop.xlane.xlu0 %753
    %v755 = vsel %vm125, %v751, 0.0
    %756 = vadd.xlane.f32.xlu0 %v755
    %v757 = vpop.xlane.xlu0 %756
    %v758 = vmul.f32 %v754, %v745
    %v759 = vmul.f32 %v757, %v745
    %v760 = vadd.f32 %v758, 1e-12
    %v761 = vadd.f32 %v759, 1e-12
    %v762 = vrsqrt.pop %v760
    %v763 = vrsqrt.pop %v761
    %v764 = vmul.f32 %v748, %v762
    %v765 = vmul.f32 %v749, %v763
    %v766 = vlaneseq
    %v767 = vshrl.u32 %v766, 7
    %v768 = vsub.s32 0, %v767
    %v769 = vrot.slane %v735, %v768
    %v770 = vmul.f32 %v764, %v769
    %v771 = vmul.f32 %v765, %v769
    %v772 = vlaneseq
    %v773 = vshrl.u32 %v772, 7
    %v774 = vsub.s32 0, %v773
    %v775 = vrot.slane %v736, %v774
    %v776 = vadd.f32 %v770, %v775
    %v777 = vadd.f32 %v771, %v775
    %v778 = vld [vmem:[%s2 + $0x8] sm:$0xff]
    %v779 = vld [vmem:[%s2 + $0x18] sm:$0xff]
    %v780 = vld [vmem:[%s2 + $0x28] sm:$0xff]
    %v781 = vld [vmem:[%s2 + $0x38] sm:$0xff]
    %v782 = vld [vmem:[#allocation8 + $0x4] sm:$0x1]
    %v783 = vld [vmem:[%s2 + $0x48] sm:$0xff]
    %v784 = vld [vmem:[%s2 + $0x58] sm:$0xff]
    %v785 = vld [vmem:[%s2 + $0x68] sm:$0xff]
    %v786 = vld [vmem:[%s2 + $0x78] sm:$0xff]
    %v787 = vld [vmem:[#allocation8 + $0x5] sm:$0x1]
    %v788 = vlaneseq
    %v789 = vshrl.u32 %v788, 7
    %v790 = vsub.s32 0, %v789
    %v791 = vrot.slane %v782, %v790
    %v793 = vsel %vm125, %v776, 0
    %v796 = vsel %vm125, %v777, 0
    %798 = vmatprep.subr.mxu0 0.0
    %799 = vmatpush1.msra.mxu0 0.0
    %800 = vmatprep.subr.mxu0 0.0
    %801 = vmatpush1.msra.mxu0 0.0
    %802 = vmatprep.subr.mxu0 0.0
    %803 = vmatpush1.msra.mxu0 0.0
    %804 = vmatprep.subr.mxu0 0.0
    %805 = vmatpush1.msra.mxu0 0.0
    %806 = vmatprep.subr.mxu0 0.0
    %807 = vmatpush1.msra.mxu0 0.0
    %808 = vmatprep.subr.mxu0 0.0
    %809 = vmatpush1.msra.mxu0 0.0
    %810 = vmatprep.subr.mxu0 0.0
    %811 = vmatpush1.msra.mxu0 0.0
    %812 = vmatprep.subr.mxu0 0.0
    %813 = vmatpush1.msra.mxu0 0.0
    %814 = vmatprep.subr.mxu0 0.0
    %815 = vmatpush1.msra.mxu0 0.0
    %816 = vmatprep.subr.mxu0 0.0
    %817 = vmatpush1.msra.mxu0 0.0
    %818 = vmatprep.subr.mxu0 0.0
    %819 = vmatpush1.msra.mxu0 0.0
    %820 = vmatprep.subr.mxu0 0.0
    %821 = vmatpush1.msra.mxu0 0.0
    %822 = vmatprep.subr.mxu0 0.0
    %823 = vmatpush1.msra.mxu0 %v781
    %824 = vmatprep.subr.mxu0 0.0
    %825 = vmatpush1.msra.mxu0 %v780
    %826 = vmatprep.subr.mxu0 0.0
    %827 = vmatpush1.msra.mxu0 %v779
    %828 = vmatprep.subr.mxu0 0.0
    %829 = vmatpush1.msra.mxu0 %v778
    %830 = vmatprep.subr.mxu0 0.0
    %831 = vmatpush2.msra.mxu0 0.0
    %832 = vmatprep.subr.mxu0 0.0
    %833 = vmatpush2.msra.mxu0 0.0
    %834 = vmatprep.subr.mxu0 0.0
    %835 = vmatpush2.msra.mxu0 0.0
    %836 = vmatprep.subr.mxu0 0.0
    %837 = vmatpush2.msra.mxu0 0.0
    %838 = vmatprep.subr.mxu0 0.0
    %839 = vmatpush2.msra.mxu0 0.0
    %840 = vmatprep.subr.mxu0 0.0
    %841 = vmatpush2.msra.mxu0 0.0
    %842 = vmatprep.subr.mxu0 0.0
    %843 = vmatpush2.msra.mxu0 0.0
    %844 = vmatprep.subr.mxu0 0.0
    %845 = vmatpush2.msra.mxu0 0.0
    %846 = vmatprep.subr.mxu0 0.0
    %847 = vmatpush2.msra.mxu0 0.0
    %848 = vmatprep.subr.mxu0 0.0
    %849 = vmatpush2.msra.mxu0 0.0
    %850 = vmatprep.subr.mxu0 0.0
    %851 = vmatpush2.msra.mxu0 0.0
    %852 = vmatprep.subr.mxu0 0.0
    %853 = vmatpush2.msra.mxu0 0.0
    %854 = vmatprep.subr.mxu0 0.0
    %855 = vmatpush2.msra.mxu0 0.0
    %856 = vmatprep.subr.mxu0 0.0
    %857 = vmatpush2.msra.mxu0 0.0
    %858 = vmatprep.subr.mxu0 0.0
    %859 = vmatpush2.msra.mxu0 0.0
    %860 = vmatprep.subr.mxu0 0.0
    %861 = vmatpush2.msra.mxu0 0.0
    %862 = vmatprep.mubr.f32.mxu0 0.0
    %863 = vmatmul.mubr.f32.gmra.mxu0 %v793
    %v864 = vpop.f32.mrf.mxu0
    %v865 = vadd.f32 %v791, %v864
    %v866 = vpop.f32.mrf.mxu0
    %867 = vmatprep.mubr.f32.mxu0 0.0
    %868 = vmatmul.mubr.f32.gmra.mxu0 %v796
    %v869 = vpop.f32.mrf.mxu0
    %v870 = vadd.f32 %v791, %v869
    %v871 = vpop.f32.mrf.mxu0
    %872 = vdwg.mxu0
    %v873 = vmul.f32 %v865, %v865
    %v874 = vmul.f32 %v870, %v870
    %v875 = vmul.f32 %v865, %v873
    %v876 = vmul.f32 %v870, %v874
    %v877 = vmul.f32 %v875, 0.044715
    %v878 = vmul.f32 %v876, 0.044715
    %v879 = vadd.f32 %v865, %v877
    %v880 = vadd.f32 %v870, %v878
    %v881 = vmul.f32 %v879, 0.7978846
    %v882 = vmul.f32 %v880, 0.7978846
    %v883 = vtanh.pop %v881
    %v884 = vtanh.pop %v882
    %v885 = vadd.f32 %v883, 1.0
    %v886 = vadd.f32 %v884, 1.0
    %v887 = vmul.f32 %v885, 0.5
    %v888 = vmul.f32 %v886, 0.5
    %v889 = vmul.f32 %v865, %v887
    %v890 = vmul.f32 %v870, %v888
    %v891 = vlaneseq
    %v892 = vshrl.u32 %v891, 7
    %v893 = vsub.s32 0, %v892
    %v894 = vrot.slane %v787, %v893
    %903 = vrot.lane.b32.xlu0 %v778, 64
    %v904 = vpop.permute.xlu0 %903
    %905 = vrot.lane.b32.xlu0 %v779, 64
    %v906 = vpop.permute.xlu0 %905
    %907 = vrot.lane.b32.xlu0 %v780, 64
    %v908 = vpop.permute.xlu0 %907
    %909 = vrot.lane.b32.xlu0 %v781, 64
    %v910 = vpop.permute.xlu0 %909
    %911 = vrot.lane.b32.xlu0 %v783, 64
    %v912 = vpop.permute.xlu0 %911
    %913 = vrot.lane.b32.xlu0 %v784, 64
    %v914 = vpop.permute.xlu0 %913
    %915 = vrot.lane.b32.xlu0 %v785, 64
    %v916 = vpop.permute.xlu0 %915
    %917 = vrot.lane.b32.xlu0 %v786, 64
    %v918 = vpop.permute.xlu0 %917
    %vm927 = vcmask 523264
    %v929 = vsel %vm927, %v889, 0
    %v932 = vsel %vm927, %v890, 0
    %934 = vmatprep.subr.mxu0 0.0
    %935 = vmatpush1.msra.mxu0 0.0
    %936 = vmatprep.subr.mxu0 0.0
    %937 = vmatpush1.msra.mxu0 0.0
    %938 = vmatprep.subr.mxu0 0.0
    %939 = vmatpush1.msra.mxu0 0.0
    %940 = vmatprep.subr.mxu0 0.0
    %941 = vmatpush1.msra.mxu0 0.0
    %942 = vmatprep.subr.mxu0 0.0
    %943 = vmatpush1.msra.mxu0 0.0
    %944 = vmatprep.subr.mxu0 0.0
    %945 = vmatpush1.msra.mxu0 0.0
    %946 = vmatprep.subr.mxu0 0.0
    %947 = vmatpush1.msra.mxu0 0.0
    %948 = vmatprep.subr.mxu0 0.0
    %949 = vmatpush1.msra.mxu0 0.0
    %950 = vmatprep.subr.mxu0 0.0
    %951 = vmatpush1.msra.mxu0 %v918
    %952 = vmatprep.subr.mxu0 0.0
    %953 = vmatpush1.msra.mxu0 %v916
    %954 = vmatprep.subr.mxu0 0.0
    %955 = vmatpush1.msra.mxu0 %v914
    %956 = vmatprep.subr.mxu0 0.0
    %957 = vmatpush1.msra.mxu0 %v912
    %958 = vmatprep.subr.mxu0 0.0
    %959 = vmatpush1.msra.mxu0 %v910
    %960 = vmatprep.subr.mxu0 0.0
    %961 = vmatpush1.msra.mxu0 %v908
    %962 = vmatprep.subr.mxu0 0.0
    %963 = vmatpush1.msra.mxu0 %v906
    %964 = vmatprep.subr.mxu0 0.0
    %965 = vmatpush1.msra.mxu0 %v904
    %966 = vmatprep.subr.mxu0 0.0
    %967 = vmatpush2.msra.mxu0 0.0
    %968 = vmatprep.subr.mxu0 0.0
    %969 = vmatpush2.msra.mxu0 0.0
    %970 = vmatprep.subr.mxu0 0.0
    %971 = vmatpush2.msra.mxu0 0.0
    %972 = vmatprep.subr.mxu0 0.0
    %973 = vmatpush2.msra.mxu0 0.0
    %974 = vmatprep.subr.mxu0 0.0
    %975 = vmatpush2.msra.mxu0 0.0
    %976 = vmatprep.subr.mxu0 0.0
    %977 = vmatpush2.msra.mxu0 0.0
    %978 = vmatprep.subr.mxu0 0.0
    %979 = vmatpush2.msra.mxu0 0.0
    %980 = vmatprep.subr.mxu0 0.0
    %981 = vmatpush2.msra.mxu0 0.0
    %982 = vmatprep.subr.mxu0 0.0
    %983 = vmatpush2.msra.mxu0 0.0
    %984 = vmatprep.subr.mxu0 0.0
    %985 = vmatpush2.msra.mxu0 0.0
    %986 = vmatprep.subr.mxu0 0.0
    %987 = vmatpush2.msra.mxu0 0.0
    %988 = vmatprep.subr.mxu0 0.0
    %989 = vmatpush2.msra.mxu0 0.0
    %990 = vmatprep.subr.mxu0 0.0
    %991 = vmatpush2.msra.mxu0 0.0
    %992 = vmatprep.subr.mxu0 0.0
    %993 = vmatpush2.msra.mxu0 0.0
    %994 = vmatprep.subr.mxu0 0.0
    %995 = vmatpush2.msra.mxu0 0.0
    %996 = vmatprep.subr.mxu0 0.0
    %997 = vmatpush2.msra.mxu0 0.0
    %998 = vmatprep.mubr.f32.mxu0 0.0
    %999 = vmatmul.mubr.f32.gmra.mxu0 %v929
    %v1000 = vpop.f32.mrf.mxu0
    %v1001 = vadd.f32 %v894, %v1000
    %v1002 = vpop.f32.mrf.mxu0
    %1003 = vmatprep.mubr.f32.mxu0 0.0
    %1004 = vmatmul.mubr.f32.gmra.mxu0 %v932
    %v1005 = vpop.f32.mrf.mxu0
    %v1006 = vadd.f32 %v894, %v1005
    %v1007 = vpop.f32.mrf.mxu0
    %1008 = vdwg.mxu0
    %v1009 = vld [vmem:[#allocation8 + $0x6] sm:$0x1]
    %v1010 = vld [vmem:[#allocation8 + $0x7] sm:$0x1]
    %v1011 = vadd.f32 %v776, %v1001
    %v1012 = vadd.f32 %v777, %v1006
    %v1013 = vsel %vm125, %v1011, 0.0
    %1014 = vadd.xlane.f32.xlu0 %v1013
    %v1015 = vpop.xlane.xlu0 %1014
    %v1016 = vsel %vm125, %v1012, 0.0
    %1017 = vadd.xlane.f32.xlu0 %v1016
    %v1018 = vpop.xlane.xlu0 %1017
    %v1019 = vmul.f32 %v1015, %v745
    %v1020 = vmul.f32 %v1018, %v745
    %v1021 = vsub.f32 %v1011, %v1019
    %v1022 = vsub.f32 %v1012, %v1020
    %v1023 = vmul.f32 %v1021, %v1021
    %v1024 = vmul.f32 %v1022, %v1022
    %v1025 = vsel %vm125, %v1023, 0.0
    %1026 = vadd.xlane.f32.xlu0 %v1025
    %v1027 = vpop.xlane.xlu0 %1026
    %v1028 = vsel %vm125, %v1024, 0.0
    %1029 = vadd.xlane.f32.xlu0 %v1028
    %v1030 = vpop.xlane.xlu0 %1029
    %v1031 = vmul.f32 %v1027, %v745
    %v1032 = vmul.f32 %v1030, %v745
    %v1033 = vadd.f32 %v1031, 1e-12
    %v1034 = vadd.f32 %v1032, 1e-12
    %v1035 = vrsqrt.pop %v1033
    %v1036 = vrsqrt.pop %v1034
    %v1037 = vmul.f32 %v1021, %v1035
    %v1038 = vmul.f32 %v1022, %v1036
    %v1039 = vlaneseq
    %v1040 = vshrl.u32 %v1039, 7
    %v1041 = vsub.s32 0, %v1040
    %v1042 = vrot.slane %v1009, %v1041
    %v1043 = vmul.f32 %v1037, %v1042
    %v1044 = vmul.f32 %v1038, %v1042
    %v1045 = vlaneseq
    %v1046 = vshrl.u32 %v1045, 7
    %v1047 = vsub.s32 0, %v1046
    %v1048 = vrot.slane %v1010, %v1047
    %v1049 = vadd.f32 %v1043, %v1048
    %v1050 = vadd.f32 %v1044, %v1048
    %1051 = vst.msk [vmem:[#allocation9] sm:$0xff] %vm125, %v1049
    %1052 = vst.msk [vmem:[#allocation9 + $0x8] sm:$0xff] %vm125, %v1050
    // Predicated region
    $region26: #{hf_encoder_forward.1} parent=1 // pred_check
      _
    $region27: #{hf_encoder_forward.1} parent=1 // pred_check_branch
      %1054 = sbr.rel (0) target = $region29
    $region28: #{hf_encoder_forward.1} parent=1 // pred_region
      %s1056 = ssub.s32 256, 256
      %1057 = vsyncadd [#allocation6], %s1056
      %s1058 = sshll.u32 [#allocation9], 4
      %s1059 = int_to_ptr.vmem [resolvable:$true] %s1058
      %1064 = dma.vmem_to_hbm [thread:$0]  %s1059, 256, %s4, [#allocation6], 128, 128, 8
    $region29: #{hf_encoder_forward.1} parent=1 // pred_fallthru
      _
    // Predicated region
    $region30: #{hf_encoder_forward.1} parent=1 // pred_check
      _
    $region31: #{hf_encoder_forward.1} parent=1 // pred_check_branch
      %1066 = sbr.rel (0) target = $region33
    $region32: #{hf_encoder_forward.1} parent=1 // pred_region
      %1067 = dma.done [#allocation6], 256
    $region33: #{hf_encoder_forward.1} parent=1 // pred_fallthru
      _
    %1068 = vsyncpa [#allocation5], 1
    %1069 = vsyncpa [#allocation6], 1
    %1070 = vsyncpa [#allocation7], 1

</llo_original>
